<compile_context>
chip_gen: v7x
topology: tpu7x:2x2x1
jax: 0.10.0
libtpu: 0.0.40
codegen_flags: <defaults>
</compile_context>

<pallas_src>
import jax
import jax.numpy as jnp
from jax.experimental import pallas as pl
from jax.experimental.pallas import tpu as pltpu

EPS = 1e-5


def confidnet_kernel(x_ref, t_ref, w1_ref, p1_ref, w2_ref, p2_ref,
                     loss_ref, out_ref):
    C = out_ref.shape[-1]

    p1 = p1_ref[...]          # (3, 256)   f32 rows: [b1; gamma1; beta1]
    p2 = p2_ref[...]          # (4+C, 64)  f32 rows: [b2; gamma2; beta2; b3pad; w3^T]

    # --- Layer 1: Linear(D, 256) + ReLU ------------------------------------
    # In-kernel bf16 cast of the f32 input block (a handful of VPU bundles);
    # MXU runs bf16 operands with f32 accumulation.
    x = x_ref[...].astype(jnp.bfloat16)
    h1 = jnp.dot(x, w1_ref[...], preferred_element_type=jnp.float32)
    h1 = jnp.maximum(h1 + p1[0:1, :], 0.0)

    # --- BatchNorm1d(256), training-mode batch stats (one-pass moments) ----
    inv_b = 1.0 / h1.shape[0]
    m1 = jnp.sum(h1, axis=0, keepdims=True) * inv_b
    ms1 = jnp.sum(h1 * h1, axis=0, keepdims=True) * inv_b
    v1 = jnp.maximum(ms1 - m1 * m1, 0.0)            # biased variance
    s1 = p1[1:2, :] * jax.lax.rsqrt(v1 + EPS)       # gamma / sqrt(var+eps)
    t1 = p1[2:3, :] - m1 * s1                       # beta  - mean*scale
    # Fused normalize + bf16 downcast: single read/write pass over h1.
    h1b = (h1 * s1 + t1).astype(jnp.bfloat16)
    # Dropout(p=0.1) -> identity (see TODO above)

    # --- Layer 2: Linear(256, 64) + ReLU ------------------------------------
    h2 = jnp.dot(h1b, w2_ref[...], preferred_element_type=jnp.float32)
    h2 = jnp.maximum(h2 + p2[0:1, :], 0.0)

    # --- BatchNorm1d(64): stats only; normalization folded into the head ---
    inv_b2 = 1.0 / h2.shape[0]
    m2 = jnp.sum(h2, axis=0, keepdims=True) * inv_b2
    ms2 = jnp.sum(h2 * h2, axis=0, keepdims=True) * inv_b2
    v2 = jnp.maximum(ms2 - m2 * m2, 0.0)
    s2 = p2[1:2, :] * jax.lax.rsqrt(v2 + EPS)       # (1, 64)
    t2 = p2[2:3, :] - m2 * s2                       # (1, 64)
    # Dropout(p=0.1) -> identity

    # --- Layer 3: Linear(64, C) with BN2 folded in --------------------------
    #   out = (h2*s2 + t2) @ w3 + b3  =  h2 @ (s2*w3) + (t2 @ w3 + b3)
    b3 = p2[3:4, :C]                                # (1, C)
    w3t = p2[4:4 + C, :]                            # (C, 64)
    wr = w3t * s2                                   # BN-folded head weights
    bias_col = jnp.sum(w3t * t2, axis=-1, keepdims=True)   # (C, 1)

    if C == 1:
        # VPU path: elementwise mul + lane reduce; skips a near-empty MXU pass.
        out = jnp.sum(h2 * wr, axis=-1, keepdims=True) + bias_col + b3
    else:
        out = jax.lax.dot_general(
            h2, wr, (((1,), (1,)), ((), ())),
            preferred_element_type=jnp.float32) + bias_col.reshape(1, C) + b3
    out_ref[...] = out

    # --- MSE loss (reduction='mean'), scalar result goes to SMEM -----------
    diff = out - t_ref[...]
    loss_ref[0, 0] = jnp.sum(diff * diff) * (1.0 / (diff.shape[0] * diff.shape[1]))


def confidnet_forward(x, targets, kp):
    """x: (B, D) f32, targets: (B, C) f32, kp: packed kernel params."""
    B = x.shape[0]
    C = kp["pack2"].shape[0] - 4
    vmem = pl.BlockSpec(memory_space=pltpu.MemorySpace.VMEM)
    smem = pl.BlockSpec(memory_space=pltpu.MemorySpace.SMEM)
    args = (x, targets, kp["w1"], kp["pack1"], kp["w2"], kp["pack2"])
    loss, output = pl.pallas_call(
        confidnet_kernel,
        out_shape=(
            jax.ShapeDtypeStruct((1, 1), jnp.float32),   # scalar loss (SMEM)
            jax.ShapeDtypeStruct((B, C), jnp.float32),   # confidence output
        ),
        in_specs=[vmem] * len(args),
        out_specs=(smem, vmem),
        # Real footprint is < 1 MiB; keep the reservation small so the kernel
        # coexists with neighboring XLA ops (v7x has only 64 MiB physical VMEM).
        compiler_params=pltpu.CompilerParams(vmem_limit_bytes=4 * 1024 * 1024),
    )(*args)
    return loss[0, 0], output


def init_params(key, input_dims, num_classes=1):
    """Logical (PyTorch-layout, f32) parameters."""
    ks = jax.random.split(key, 6)
    scale1 = 1.0 / jnp.sqrt(input_dims)
    scale2 = 1.0 / jnp.sqrt(256.0)
    scale3 = 1.0 / jnp.sqrt(64.0)
    return {
        # weights stored (in, out); biases/BN params as (1, out) rows
        "w1": jax.random.uniform(ks[0], (input_dims, 256), jnp.float32, -scale1, scale1),
        "b1": jax.random.uniform(ks[1], (1, 256), jnp.float32, -scale1, scale1),
        "g1": jnp.ones((1, 256), jnp.float32),
        "be1": jnp.zeros((1, 256), jnp.float32),
        "w2": jax.random.uniform(ks[2], (256, 64), jnp.float32, -scale2, scale2),
        "b2": jax.random.uniform(ks[3], (1, 64), jnp.float32, -scale2, scale2),
        "g2": jnp.ones((1, 64), jnp.float32),
        "be2": jnp.zeros((1, 64), jnp.float32),
        "w3": jax.random.uniform(ks[4], (64, num_classes), jnp.float32, -scale3, scale3),
        "b3": jax.random.uniform(ks[5], (1, num_classes), jnp.float32, -scale3, scale3),
    }


def pack_params(params):
    """One-time repack into the kernel's DMA-friendly layout:
    bf16 matmul weights + two consolidated f32 vector packs (w3/b3 folded in)."""
    C = params["w3"].shape[1]
    assert C <= 64, "num_classes must fit in the 64-lane pack row"
    b3_pad = jnp.zeros((1, 64), jnp.float32).at[:, :C].set(params["b3"])
    w3t = params["w3"].T.astype(jnp.float32)                          # (C, 64)
    return {
        "w1": params["w1"].astype(jnp.bfloat16),                      # (D, 256) bf16
        "pack1": jnp.concatenate(
            [params["b1"], params["g1"], params["be1"]], axis=0),     # (3, 256) f32
        "w2": params["w2"].astype(jnp.bfloat16),                      # (256, 64) bf16
        "pack2": jnp.concatenate(
            [params["b2"], params["g2"], params["be2"], b3_pad, w3t],
            axis=0),                                                  # (4+C, 64) f32
    }


def reference_forward(x, targets, params):
    # Pure-JAX reference mirroring the kernel's bf16-operand / f32-accumulate
    # math (two-pass BN variance, normalize-then-cast order).
    bf16 = jnp.bfloat16
    h = jnp.dot(x.astype(bf16), params["w1"].astype(bf16),
                preferred_element_type=jnp.float32) + params["b1"]
    h = jnp.maximum(h, 0.0)
    m = h.mean(0, keepdims=True); v = ((h - m) ** 2).mean(0, keepdims=True)
    h = params["g1"] * (h - m) / jnp.sqrt(v + EPS) + params["be1"]
    h = jnp.dot(h.astype(bf16), params["w2"].astype(bf16),
                preferred_element_type=jnp.float32) + params["b2"]
    h = jnp.maximum(h, 0.0)
    m = h.mean(0, keepdims=True); v = ((h - m) ** 2).mean(0, keepdims=True)
    h = params["g2"] * (h - m) / jnp.sqrt(v + EPS) + params["be2"]
    out = jnp.dot(h, params["w3"],
                  precision=jax.lax.Precision.HIGHEST) + params["b3"]
    loss = jnp.mean((out - targets) ** 2)
    return loss, out


if __name__ == "__main__":
    key = jax.random.PRNGKey(0)
    k_x, k_t, k_p = jax.random.split(key, 3)

    # Batch is a multiple of 256 so the MXU row dimension is filled on
    # v5e (128-row) and v6e/v7x (256-row) MXUs; input_dims lane-dense at 128.
    batch = 256
    input_dims = 128
    num_classes = 1

    x = jax.random.normal(k_x, (batch, input_dims), jnp.float32)
    targets = jax.random.uniform(k_t, (batch, num_classes), jnp.float32)
    params = init_params(k_p, input_dims, num_classes)
    kparams = pack_params(params)          # one-time repack (outside hot path)

    loss, output = confidnet_forward(x, targets, kparams)
    jax.block_until_ready((loss, output))

    ref_loss, ref_out = reference_forward(x, targets, params)
    assert jnp.allclose(output, ref_out, atol=2e-3, rtol=2e-3), "output mismatch"
    assert jnp.allclose(loss, ref_loss, atol=2e-3, rtol=2e-3), "loss mismatch"

    print("KERNEL_OK")
</pallas_src>

<mosaic_0001>
module attributes {stable_mosaic.version = 11 : i64} {
  func.func @confidnet_kernel(%arg0: memref<256x128xf32, #tpu.memory_space<vmem>>, %arg1: memref<256x1xf32, #tpu.memory_space<vmem>>, %arg2: memref<128x256xbf16, #tpu.memory_space<vmem>>, %arg3: memref<3x256xf32, #tpu.memory_space<vmem>>, %arg4: memref<256x64xbf16, #tpu.memory_space<vmem>>, %arg5: memref<5x64xf32, #tpu.memory_space<vmem>>, %arg6: memref<1x1xf32, #tpu.memory_space<smem>>, %arg7: memref<256x1xf32, #tpu.memory_space<vmem>>) attributes {dimension_semantics = [], scalar_prefetch = 0 : i64, scratch_operands = 0 : i64, tpu.core_type = #tpu.core_type<tc>} {
    %c0 = arith.constant 0 : index
    %c0_0 = arith.constant 0 : index
    %0 = vector.load %arg3[%c0, %c0_0] : memref<3x256xf32, #tpu.memory_space<vmem>>, vector<3x256xf32>
    %c0_1 = arith.constant 0 : index
    %c0_2 = arith.constant 0 : index
    %1 = vector.load %arg5[%c0_1, %c0_2] : memref<5x64xf32, #tpu.memory_space<vmem>>, vector<5x64xf32>
    %c0_3 = arith.constant 0 : index
    %c0_4 = arith.constant 0 : index
    %2 = vector.load %arg0[%c0_3, %c0_4] : memref<256x128xf32, #tpu.memory_space<vmem>>, vector<256x128xf32>
    %3 = arith.truncf %2 : vector<256x128xf32> to vector<256x128xbf16>
    %c0_5 = arith.constant 0 : index
    %c0_6 = arith.constant 0 : index
    %4 = vector.load %arg2[%c0_5, %c0_6] : memref<128x256xbf16, #tpu.memory_space<vmem>>, vector<128x256xbf16>
    %cst = arith.constant dense<0.000000e+00> : vector<256x256xf32>
    %5 = tpu.matmul %3, %4, %cst {dimension_numbers = #tpu.dot_dimension_numbers<[1], [0], [0], [1], [0, 0, 1, 1], [], []>} : vector<256x128xbf16>, vector<128x256xbf16>, vector<256x256xf32> -> vector<256x256xf32>
    %6 = vector.extract_strided_slice %0 {offsets = [0, 0], sizes = [1, 256], strides = [1, 1]} : vector<3x256xf32> to vector<1x256xf32>
    %7 = vector.broadcast %6 : vector<1x256xf32> to vector<256x256xf32>
    %8 = arith.addf %5, %7 : vector<256x256xf32>
    %cst_7 = arith.constant 0.000000e+00 : f32
    %9 = vector.broadcast %cst_7 : f32 to vector<256x256xf32>
    %10 = arith.maximumf %8, %9 : vector<256x256xf32>
    %cst_8 = arith.constant dense<0.000000e+00> : vector<256xf32>
    %11 = vector.multi_reduction <add>, %10, %cst_8 [0] : vector<256x256xf32> to vector<256xf32>
    %12 = vector.shape_cast %11 : vector<256xf32> to vector<1x256xf32>
    %cst_9 = arith.constant 3.906250e-03 : f32
    %13 = vector.broadcast %cst_9 : f32 to vector<1x256xf32>
    %14 = arith.mulf %12, %13 : vector<1x256xf32>
    %15 = arith.mulf %10, %10 : vector<256x256xf32>
    %cst_10 = arith.constant dense<0.000000e+00> : vector<256xf32>
    %16 = vector.multi_reduction <add>, %15, %cst_10 [0] : vector<256x256xf32> to vector<256xf32>
    %17 = vector.shape_cast %16 : vector<256xf32> to vector<1x256xf32>
    %cst_11 = arith.constant 3.906250e-03 : f32
    %18 = vector.broadcast %cst_11 : f32 to vector<1x256xf32>
    %19 = arith.mulf %17, %18 : vector<1x256xf32>
    %20 = arith.mulf %14, %14 : vector<1x256xf32>
    %21 = arith.subf %19, %20 : vector<1x256xf32>
    %cst_12 = arith.constant 0.000000e+00 : f32
    %22 = vector.broadcast %cst_12 : f32 to vector<1x256xf32>
    %23 = arith.maximumf %21, %22 : vector<1x256xf32>
    %24 = vector.extract_strided_slice %0 {offsets = [1, 0], sizes = [1, 256], strides = [1, 1]} : vector<3x256xf32> to vector<1x256xf32>
    %cst_13 = arith.constant 9.99999974E-6 : f32
    %25 = vector.broadcast %cst_13 : f32 to vector<1x256xf32>
    %26 = arith.addf %23, %25 : vector<1x256xf32>
    %27 = math.rsqrt %26 : vector<1x256xf32>
    %28 = arith.mulf %24, %27 : vector<1x256xf32>
    %29 = vector.extract_strided_slice %0 {offsets = [2, 0], sizes = [1, 256], strides = [1, 1]} : vector<3x256xf32> to vector<1x256xf32>
    %30 = arith.mulf %14, %28 : vector<1x256xf32>
    %31 = arith.subf %29, %30 : vector<1x256xf32>
    %32 = vector.broadcast %28 : vector<1x256xf32> to vector<256x256xf32>
    %33 = arith.mulf %10, %32 : vector<256x256xf32>
    %34 = vector.broadcast %31 : vector<1x256xf32> to vector<256x256xf32>
    %35 = arith.addf %33, %34 : vector<256x256xf32>
    %36 = arith.truncf %35 : vector<256x256xf32> to vector<256x256xbf16>
    %c0_14 = arith.constant 0 : index
    %c0_15 = arith.constant 0 : index
    %37 = vector.load %arg4[%c0_14, %c0_15] : memref<256x64xbf16, #tpu.memory_space<vmem>>, vector<256x64xbf16>
    %cst_16 = arith.constant dense<0.000000e+00> : vector<256x64xf32>
    %38 = tpu.matmul %36, %37, %cst_16 {dimension_numbers = #tpu.dot_dimension_numbers<[1], [0], [0], [1], [0, 0, 1, 1], [], []>} : vector<256x256xbf16>, vector<256x64xbf16>, vector<256x64xf32> -> vector<256x64xf32>
    %39 = vector.extract_strided_slice %1 {offsets = [0, 0], sizes = [1, 64], strides = [1, 1]} : vector<5x64xf32> to vector<1x64xf32>
    %40 = vector.broadcast %39 : vector<1x64xf32> to vector<256x64xf32>
    %41 = arith.addf %38, %40 : vector<256x64xf32>
    %cst_17 = arith.constant 0.000000e+00 : f32
    %42 = vector.broadcast %cst_17 : f32 to vector<256x64xf32>
    %43 = arith.maximumf %41, %42 : vector<256x64xf32>
    %cst_18 = arith.constant dense<0.000000e+00> : vector<64xf32>
    %44 = vector.multi_reduction <add>, %43, %cst_18 [0] : vector<256x64xf32> to vector<64xf32>
    %45 = vector.shape_cast %44 : vector<64xf32> to vector<1x64xf32>
    %cst_19 = arith.constant 3.906250e-03 : f32
    %46 = vector.broadcast %cst_19 : f32 to vector<1x64xf32>
    %47 = arith.mulf %45, %46 : vector<1x64xf32>
    %48 = arith.mulf %43, %43 : vector<256x64xf32>
    %cst_20 = arith.constant dense<0.000000e+00> : vector<64xf32>
    %49 = vector.multi_reduction <add>, %48, %cst_20 [0] : vector<256x64xf32> to vector<64xf32>
    %50 = vector.shape_cast %49 : vector<64xf32> to vector<1x64xf32>
    %cst_21 = arith.constant 3.906250e-03 : f32
    %51 = vector.broadcast %cst_21 : f32 to vector<1x64xf32>
    %52 = arith.mulf %50, %51 : vector<1x64xf32>
    %53 = arith.mulf %47, %47 : vector<1x64xf32>
    %54 = arith.subf %52, %53 : vector<1x64xf32>
    %cst_22 = arith.constant 0.000000e+00 : f32
    %55 = vector.broadcast %cst_22 : f32 to vector<1x64xf32>
    %56 = arith.maximumf %54, %55 : vector<1x64xf32>
    %57 = vector.extract_strided_slice %1 {offsets = [1, 0], sizes = [1, 64], strides = [1, 1]} : vector<5x64xf32> to vector<1x64xf32>
    %cst_23 = arith.constant 9.99999974E-6 : f32
    %58 = vector.broadcast %cst_23 : f32 to vector<1x64xf32>
    %59 = arith.addf %56, %58 : vector<1x64xf32>
    %60 = math.rsqrt %59 : vector<1x64xf32>
    %61 = arith.mulf %57, %60 : vector<1x64xf32>
    %62 = vector.extract_strided_slice %1 {offsets = [2, 0], sizes = [1, 64], strides = [1, 1]} : vector<5x64xf32> to vector<1x64xf32>
    %63 = arith.mulf %47, %61 : vector<1x64xf32>
    %64 = arith.subf %62, %63 : vector<1x64xf32>
    %65 = vector.extract_strided_slice %1 {offsets = [3, 0], sizes = [1, 1], strides = [1, 1]} : vector<5x64xf32> to vector<1x1xf32>
    %66 = vector.extract_strided_slice %1 {offsets = [4, 0], sizes = [1, 64], strides = [1, 1]} : vector<5x64xf32> to vector<1x64xf32>
    %67 = arith.mulf %66, %61 : vector<1x64xf32>
    %68 = arith.mulf %66, %64 : vector<1x64xf32>
    %cst_24 = arith.constant dense<0.000000e+00> : vector<1xf32>
    %69 = vector.multi_reduction <add>, %68, %cst_24 [1] : vector<1x64xf32> to vector<1xf32>
    %70 = vector.shape_cast %69 : vector<1xf32> to vector<1x1xf32>
    %71 = vector.broadcast %67 : vector<1x64xf32> to vector<256x64xf32>
    %72 = arith.mulf %43, %71 : vector<256x64xf32>
    %cst_25 = arith.constant dense<0.000000e+00> : vector<256xf32>
    %73 = vector.multi_reduction <add>, %72, %cst_25 [1] : vector<256x64xf32> to vector<256xf32>
    %74 = vector.shape_cast %73 : vector<256xf32> to vector<256x1xf32>
    %75 = vector.broadcast %70 : vector<1x1xf32> to vector<256x1xf32>
    %76 = arith.addf %74, %75 : vector<256x1xf32>
    %77 = vector.broadcast %65 : vector<1x1xf32> to vector<256x1xf32>
    %78 = arith.addf %76, %77 : vector<256x1xf32>
    %c0_26 = arith.constant 0 : index
    %c0_27 = arith.constant 0 : index
    %79 = vector.load %arg7[%c0_26, %c0_27] : memref<256x1xf32, #tpu.memory_space<vmem>>, vector<256x1xf32>
    tpu.vector_store %arg7[%c0_26, %c0_27], %78 {strides = array<i32>} : memref<256x1xf32, #tpu.memory_space<vmem>>, vector<256x1xf32>,
    %c0_28 = arith.constant 0 : index
    %c0_29 = arith.constant 0 : index
    %80 = vector.load %arg1[%c0_28, %c0_29] : memref<256x1xf32, #tpu.memory_space<vmem>>, vector<256x1xf32>
    %81 = arith.subf %78, %80 : vector<256x1xf32>
    %82 = arith.mulf %81, %81 : vector<256x1xf32>
    %83 = vector.shape_cast %82 : vector<256x1xf32> to vector<1x256x1xf32>
    %cst_30 = arith.constant dense<0.000000e+00> : vector<1xf32>
    %84 = vector.multi_reduction <add>, %83, %cst_30 [1, 2] : vector<1x256x1xf32> to vector<1xf32>
    %85 = vector.shape_cast %84 : vector<1xf32> to vector<1x1x1xf32>
    %86 = vector.extract %85[0, 0, 0] : f32 from vector<1x1x1xf32>
    %cst_31 = arith.constant 3.906250e-03 : f32
    %87 = arith.mulf %86, %cst_31 : f32
    %c0_32 = arith.constant 0 : index
    %c0_33 = arith.constant 0 : index
    %88 = memref.load %arg6[%c0_32, %c0_33] : memref<1x1xf32, #tpu.memory_space<smem>>
    memref.store %87, %arg6[%c0_32, %c0_33] : memref<1x1xf32, #tpu.memory_space<smem>>
    return
  }
}

</mosaic_0001>

<llo_original>
// kernel: tpu_custom_call.1
$region0: #{tpu_custom_call.1}
  #allocation0 [shape = 'u32[]', space=smem, size = 0x4, offset = 0x4, fixed_abs, tag = 'smem constant byte address 0x4 - core index']
  #allocation1 [shape = 'u32[144,128]{1,0:T(1,128)}', space=vmem, size = 0x12000, scoped, tag = 'internal scratch']
  %s0 = inlined_call_operand.vmem [shape: f32[256,128], index: 0, kind: input, shape index: {}]
  %s1 = inlined_call_operand.vmem [shape: f32[256,1], index: 1, kind: input, shape index: {}]
  %s2 = inlined_call_operand.vmem [shape: bf16[128,256], index: 2, kind: input, shape index: {}]
  %s3 = inlined_call_operand.vmem [shape: f32[3,256], index: 3, kind: input, shape index: {}]
  %s4 = inlined_call_operand.vmem [shape: bf16[256,64], index: 4, kind: input, shape index: {}]
  %s5 = inlined_call_operand.vmem [shape: f32[5,64], index: 5, kind: input, shape index: {}]
  %s6 = inlined_call_operand.hbm [shape: f32[1,1], index: 6, kind: output, shape index: {0}]
  %s7 = inlined_call_operand.vmem [shape: f32[256,1], index: 7, kind: output, shape index: {1}]
  %8 = xla_tuple %s6, %s7
  %s9 = sld [smem:[#allocation0]]
  $region42: #{tpu_custom_call.1} parent=0
    _
  %s11 = ssub.s32 1, %s9
  %s12 = scalar_select 0, %s11, %s9
  $region1: #{tpu_custom_call.1} parent=0
    #allocation2 [shape = 'u8[512]{0}', space=smem, size = 0x200, scoped, tag = 'output window, operand 0, single buffered']
    #allocation3 [shape = 's32[1]{0}', space=sflag, size = 0x4, scoped, tag = 'scoped memory for tpu_custom_call.1']
    %13 = vsyncpa [#allocation3], 0
    // Predicated region
    $region2: #{tpu_custom_call.1} parent=1 // pred_check
      _
    $region3: #{tpu_custom_call.1} parent=1 // pred_check_branch
      %15 = sbr.rel (0) target = $region5
    $region4: #{tpu_custom_call.1} parent=1 // pred_region
      _
    $region5: #{tpu_custom_call.1} parent=1 // pred_fallthru
      _
    // Predicated region
    $region6: #{tpu_custom_call.1} parent=1 // pred_check
      _
    $region7: #{tpu_custom_call.1} parent=1 // pred_check_branch
      %17 = sbr.rel (0) target = $region9
    $region8: #{tpu_custom_call.1} parent=1 // pred_region
      _
    $region9: #{tpu_custom_call.1} parent=1 // pred_fallthru
      _
    // Predicated region
    $region10: #{tpu_custom_call.1} parent=1 // pred_check
      _
    $region11: #{tpu_custom_call.1} parent=1 // pred_check_branch
      %19 = sbr.rel (0) target = $region13
    $region12: #{tpu_custom_call.1} parent=1 // pred_region
      _
    $region13: #{tpu_custom_call.1} parent=1 // pred_fallthru
      _
    // Predicated region
    $region14: #{tpu_custom_call.1} parent=1 // pred_check
      _
    $region15: #{tpu_custom_call.1} parent=1 // pred_check_branch
      %21 = sbr.rel (0) target = $region17
    $region16: #{tpu_custom_call.1} parent=1 // pred_region
      _
    $region17: #{tpu_custom_call.1} parent=1 // pred_fallthru
      _
    // Predicated region
    $region18: #{tpu_custom_call.1} parent=1 // pred_check
      _
    $region19: #{tpu_custom_call.1} parent=1 // pred_check_branch
      %23 = sbr.rel (0) target = $region21
    $region20: #{tpu_custom_call.1} parent=1 // pred_region
      _
    $region21: #{tpu_custom_call.1} parent=1 // pred_fallthru
      _
    // Predicated region
    $region22: #{tpu_custom_call.1} parent=1 // pred_check
      _
    $region23: #{tpu_custom_call.1} parent=1 // pred_check_branch
      %25 = sbr.rel (0) target = $region25
    $region24: #{tpu_custom_call.1} parent=1 // pred_region
      _
    $region25: #{tpu_custom_call.1} parent=1 // pred_fallthru
      _
    %v27 = vld [vmem:[%s3] sm:$0x77]
    %v28 = vld [vmem:[%s5] sm:$0x1f]
    %v29 = vld [vmem:[%s0] sm:$0xff]
    %v30 = vld [vmem:[%s0 + $0x8] sm:$0xff]
    %v31 = vld [vmem:[%s0 + $0x10] sm:$0xff]
    %v32 = vld [vmem:[%s0 + $0x18] sm:$0xff]
    %v33 = vld [vmem:[%s0 + $0x20] sm:$0xff]
    %v34 = vld [vmem:[%s0 + $0x28] sm:$0xff]
    %v35 = vld [vmem:[%s0 + $0x30] sm:$0xff]
    %v36 = vld [vmem:[%s0 + $0x38] sm:$0xff]
    %v37 = vld [vmem:[%s0 + $0x40] sm:$0xff]
    %v38 = vld [vmem:[%s0 + $0x48] sm:$0xff]
    %v39 = vld [vmem:[%s0 + $0x50] sm:$0xff]
    %v40 = vld [vmem:[%s0 + $0x58] sm:$0xff]
    %v41 = vld [vmem:[%s0 + $0x60] sm:$0xff]
    %v42 = vld [vmem:[%s0 + $0x68] sm:$0xff]
    %v43 = vld [vmem:[%s0 + $0x70] sm:$0xff]
    %v44 = vld [vmem:[%s0 + $0x78] sm:$0xff]
    %v45 = vld [vmem:[%s0 + $0x80] sm:$0xff]
    %v46 = vld [vmem:[%s0 + $0x88] sm:$0xff]
    %v47 = vld [vmem:[%s0 + $0x90] sm:$0xff]
    %v48 = vld [vmem:[%s0 + $0x98] sm:$0xff]
    %v49 = vld [vmem:[%s0 + $0xa0] sm:$0xff]
    %v50 = vld [vmem:[%s0 + $0xa8] sm:$0xff]
    %v51 = vld [vmem:[%s0 + $0xb0] sm:$0xff]
    %v52 = vld [vmem:[%s0 + $0xb8] sm:$0xff]
    %v53 = vld [vmem:[%s0 + $0xc0] sm:$0xff]
    %v54 = vld [vmem:[%s0 + $0xc8] sm:$0xff]
    %v55 = vld [vmem:[%s0 + $0xd0] sm:$0xff]
    %v56 = vld [vmem:[%s0 + $0xd8] sm:$0xff]
    %v57 = vld [vmem:[%s0 + $0xe0] sm:$0xff]
    %v58 = vld [vmem:[%s0 + $0xe8] sm:$0xff]
    %v59 = vld [vmem:[%s0 + $0xf0] sm:$0xff]
    %v60 = vld [vmem:[%s0 + $0xf8] sm:$0xff]
    %v61 = vpack.c.bf16 %v30, %v29
    %v62 = vpack.c.bf16 %v32, %v31
    %v63 = vpack.c.bf16 %v34, %v33
    %v64 = vpack.c.bf16 %v36, %v35
    %v65 = vpack.c.bf16 %v38, %v37
    %v66 = vpack.c.bf16 %v40, %v39
    %v67 = vpack.c.bf16 %v42, %v41
    %v68 = vpack.c.bf16 %v44, %v43
    %v69 = vpack.c.bf16 %v46, %v45
    %v70 = vpack.c.bf16 %v48, %v47
    %v71 = vpack.c.bf16 %v50, %v49
    %v72 = vpack.c.bf16 %v52, %v51
    %v73 = vpack.c.bf16 %v54, %v53
    %v74 = vpack.c.bf16 %v56, %v55
    %v75 = vpack.c.bf16 %v58, %v57
    %v76 = vpack.c.bf16 %v60, %v59
    %v77 = vld [vmem:[%s2] sm:$0xff]
    %v78 = vld [vmem:[%s2 + $0x8] sm:$0xff]
    %v79 = vld [vmem:[%s2 + $0x10] sm:$0xff]
    %v80 = vld [vmem:[%s2 + $0x18] sm:$0xff]
    %v81 = vld [vmem:[%s2 + $0x20] sm:$0xff]
    %v82 = vld [vmem:[%s2 + $0x28] sm:$0xff]
    %v83 = vld [vmem:[%s2 + $0x30] sm:$0xff]
    %v84 = vld [vmem:[%s2 + $0x38] sm:$0xff]
    %v85 = vld [vmem:[%s2 + $0x40] sm:$0xff]
    %v86 = vld [vmem:[%s2 + $0x48] sm:$0xff]
    %v87 = vld [vmem:[%s2 + $0x50] sm:$0xff]
    %v88 = vld [vmem:[%s2 + $0x58] sm:$0xff]
    %v89 = vld [vmem:[%s2 + $0x60] sm:$0xff]
    %v90 = vld [vmem:[%s2 + $0x68] sm:$0xff]
    %v91 = vld [vmem:[%s2 + $0x70] sm:$0xff]
    %v92 = vld [vmem:[%s2 + $0x78] sm:$0xff]
    %v94 = vlaneseq
    %v95 = vshrl.u32 %v94, 7
    %v96 = vsub.s32 0, %v95
    %v97 = vrot.slane %v27, %v96
    %v98 = vlaneseq
    %v99 = vshrl.u32 %v98, 7
    %v100 = vsub.s32 4, %v99
    %v101 = vrot.slane %v27, %v100
    %v104 = vlaneseq
    %v105 = vshrl.u32 %v104, 7
    %v106 = vsub.s32 0, %v105
    %v107 = vrot.slane %v97, %v106
    %v108 = vlaneseq
    %v109 = vshrl.u32 %v108, 7
    %v110 = vsub.s32 0, %v109
    %v111 = vrot.slane %v101, %v110
    %v128 = vunpack.c.l.b16 %v77
    %v129 = vunpack.c.h.b16 %v77
    %v130 = vunpack.c.l.b16 %v78
    %v131 = vunpack.c.h.b16 %v78
    %v132 = vunpack.c.l.b16 %v79
    %v133 = vunpack.c.h.b16 %v79
    %v134 = vunpack.c.l.b16 %v80
    %v135 = vunpack.c.h.b16 %v80
    %v136 = vunpack.c.l.b16 %v81
    %v137 = vunpack.c.h.b16 %v81
    %v138 = vunpack.c.l.b16 %v82
    %v139 = vunpack.c.h.b16 %v82
    %v140 = vunpack.c.l.b16 %v83
    %v141 = vunpack.c.h.b16 %v83
    %v142 = vunpack.c.l.b16 %v84
    %v143 = vunpack.c.h.b16 %v84
    %v144 = vunpack.c.l.b16 %v85
    %v145 = vunpack.c.h.b16 %v85
    %v146 = vunpack.c.l.b16 %v86
    %v147 = vunpack.c.h.b16 %v86
    %v148 = vunpack.c.l.b16 %v87
    %v149 = vunpack.c.h.b16 %v87
    %v150 = vunpack.c.l.b16 %v88
    %v151 = vunpack.c.h.b16 %v88
    %v152 = vunpack.c.l.b16 %v89
    %v153 = vunpack.c.h.b16 %v89
    %v154 = vunpack.c.l.b16 %v90
    %v155 = vunpack.c.h.b16 %v90
    %v156 = vunpack.c.l.b16 %v91
    %v157 = vunpack.c.h.b16 %v91
    %v158 = vunpack.c.l.b16 %v92
    %v159 = vunpack.c.h.b16 %v92
    %v160 = vpack.c.b16 %v130, %v128
    %v161 = vpack.c.b16 %v131, %v129
    %v162 = vpack.c.b16 %v134, %v132
    %v163 = vpack.c.b16 %v135, %v133
    %v164 = vpack.c.b16 %v138, %v136
    %v165 = vpack.c.b16 %v139, %v137
    %v166 = vpack.c.b16 %v142, %v140
    %v167 = vpack.c.b16 %v143, %v141
    %v168 = vpack.c.b16 %v146, %v144
    %v169 = vpack.c.b16 %v147, %v145
    %v170 = vpack.c.b16 %v150, %v148
    %v171 = vpack.c.b16 %v151, %v149
    %v172 = vpack.c.b16 %v154, %v152
    %v173 = vpack.c.b16 %v155, %v153
    %v174 = vpack.c.b16 %v158, %v156
    %v175 = vpack.c.b16 %v159, %v157
    %192 = vmatprep.subr.bf16.mxu0 %v161
    %193 = vmatpush1.bf16.msra.mxu0 %v160
    %194 = vmatprep.subr.bf16.mxu0 %v163
    %195 = vmatpush1.bf16.msra.mxu0 %v162
    %196 = vmatprep.subr.bf16.mxu0 %v165
    %197 = vmatpush1.bf16.msra.mxu0 %v164
    %198 = vmatprep.subr.bf16.mxu0 %v167
    %199 = vmatpush1.bf16.msra.mxu0 %v166
    %200 = vmatprep.subr.bf16.mxu0 %v169
    %201 = vmatpush1.bf16.msra.mxu0 %v168
    %202 = vmatprep.subr.bf16.mxu0 %v171
    %203 = vmatpush1.bf16.msra.mxu0 %v170
    %204 = vmatprep.subr.bf16.mxu0 %v173
    %205 = vmatpush1.bf16.msra.mxu0 %v172
    %206 = vmatprep.subr.bf16.mxu0 %v175
    %207 = vmatpush1.bf16.msra.mxu0 %v174
    %208 = vmatprep.subr.bf16.mxu0 0
    %209 = vmatpush1.bf16.msra.mxu0 0
    %210 = vmatprep.subr.bf16.mxu0 0
    %211 = vmatpush1.bf16.msra.mxu0 0
    %212 = vmatprep.subr.bf16.mxu0 0
    %213 = vmatpush1.bf16.msra.mxu0 0
    %214 = vmatprep.subr.bf16.mxu0 0
    %215 = vmatpush1.bf16.msra.mxu0 0
    %216 = vmatprep.subr.bf16.mxu0 0
    %217 = vmatpush1.bf16.msra.mxu0 0
    %218 = vmatprep.subr.bf16.mxu0 0
    %219 = vmatpush1.bf16.msra.mxu0 0
    %220 = vmatprep.subr.bf16.mxu0 0
    %221 = vmatpush1.bf16.msra.mxu0 0
    %222 = vmatprep.subr.bf16.mxu0 0
    %223 = vmatpush1.bf16.msra.mxu0 0
    %224 = vmatprep.mubr.bf16.mxu0 0
    %225 = vmatmul.mubr.bf16.gmra.mrb[0].mxu0 %v61
    %v226 = vpop.f32.mrb[0].mxu0
    %v227 = vadd.f32 %v107, %v226
    %v228 = vpop.f32.mrb[0].mxu0
    %v229 = vadd.f32 %v111, %v228
    %v230 = vpop.f32.mrb[0].mxu0
    %v231 = vadd.f32 %v107, %v230
    %v232 = vpop.f32.mrb[0].mxu0
    %v233 = vadd.f32 %v111, %v232
    %234 = vmatprep.mubr.bf16.mxu0 0
    %235 = vmatmul.mubr.bf16.gmra.mrb[0].mxu0 %v62
    %v236 = vpop.f32.mrb[0].mxu0
    %v237 = vadd.f32 %v107, %v236
    %v238 = vpop.f32.mrb[0].mxu0
    %v239 = vadd.f32 %v111, %v238
    %v240 = vpop.f32.mrb[0].mxu0
    %v241 = vadd.f32 %v107, %v240
    %v242 = vpop.f32.mrb[0].mxu0
    %v243 = vadd.f32 %v111, %v242
    %244 = vmatprep.mubr.bf16.mxu0 0
    %245 = vmatmul.mubr.bf16.gmra.mrb[0].mxu0 %v63
    %v246 = vpop.f32.mrb[0].mxu0
    %v247 = vadd.f32 %v107, %v246
    %v248 = vpop.f32.mrb[0].mxu0
    %v249 = vadd.f32 %v111, %v248
    %v250 = vpop.f32.mrb[0].mxu0
    %v251 = vadd.f32 %v107, %v250
    %v252 = vpop.f32.mrb[0].mxu0
    %v253 = vadd.f32 %v111, %v252
    %254 = vmatprep.mubr.bf16.mxu0 0
    %255 = vmatmul.mubr.bf16.gmra.mrb[0].mxu0 %v64
    %v256 = vpop.f32.mrb[0].mxu0
    %v257 = vadd.f32 %v107, %v256
    %v258 = vpop.f32.mrb[0].mxu0
    %v259 = vadd.f32 %v111, %v258
    %v260 = vpop.f32.mrb[0].mxu0
    %v261 = vadd.f32 %v107, %v260
    %v262 = vpop.f32.mrb[0].mxu0
    %v263 = vadd.f32 %v111, %v262
    %264 = vmatprep.mubr.bf16.mxu0 0
    %265 = vmatmul.mubr.bf16.gmra.mrb[0].mxu0 %v65
    %v266 = vpop.f32.mrb[0].mxu0
    %v267 = vadd.f32 %v107, %v266
    %v268 = vpop.f32.mrb[0].mxu0
    %v269 = vadd.f32 %v111, %v268
    %v270 = vpop.f32.mrb[0].mxu0
    %v271 = vadd.f32 %v107, %v270
    %v272 = vpop.f32.mrb[0].mxu0
    %v273 = vadd.f32 %v111, %v272
    %274 = vmatprep.mubr.bf16.mxu0 0
    %275 = vmatmul.mubr.bf16.gmra.mrb[0].mxu0 %v66
    %v276 = vpop.f32.mrb[0].mxu0
    %v277 = vadd.f32 %v107, %v276
    %v278 = vpop.f32.mrb[0].mxu0
    %v279 = vadd.f32 %v111, %v278
    %v280 = vpop.f32.mrb[0].mxu0
    %v281 = vadd.f32 %v107, %v280
    %v282 = vpop.f32.mrb[0].mxu0
    %v283 = vadd.f32 %v111, %v282
    %284 = vmatprep.mubr.bf16.mxu0 0
    %285 = vmatmul.mubr.bf16.gmra.mrb[0].mxu0 %v67
    %v286 = vpop.f32.mrb[0].mxu0
    %v287 = vadd.f32 %v107, %v286
    %v288 = vpop.f32.mrb[0].mxu0
    %v289 = vadd.f32 %v111, %v288
    %v290 = vpop.f32.mrb[0].mxu0
    %v291 = vadd.f32 %v107, %v290
    %v292 = vpop.f32.mrb[0].mxu0
    %v293 = vadd.f32 %v111, %v292
    %294 = vmatprep.mubr.bf16.mxu0 0
    %295 = vmatmul.mubr.bf16.gmra.mrb[0].mxu0 %v68
    %v296 = vpop.f32.mrb[0].mxu0
    %v297 = vadd.f32 %v107, %v296
    %v298 = vpop.f32.mrb[0].mxu0
    %v299 = vadd.f32 %v111, %v298
    %v300 = vpop.f32.mrb[0].mxu0
    %v301 = vadd.f32 %v107, %v300
    %v302 = vpop.f32.mrb[0].mxu0
    %v303 = vadd.f32 %v111, %v302
    %304 = vmatprep.mubr.bf16.mxu0 0
    %305 = vmatmul.mubr.bf16.gmra.mrb[0].mxu0 %v69
    %v306 = vpop.f32.mrb[0].mxu0
    %v307 = vadd.f32 %v107, %v306
    %v308 = vpop.f32.mrb[0].mxu0
    %v309 = vadd.f32 %v111, %v308
    %v310 = vpop.f32.mrb[0].mxu0
    %v311 = vadd.f32 %v107, %v310
    %v312 = vpop.f32.mrb[0].mxu0
    %v313 = vadd.f32 %v111, %v312
    %314 = vmatprep.mubr.bf16.mxu0 0
    %315 = vmatmul.mubr.bf16.gmra.mrb[0].mxu0 %v70
    %v316 = vpop.f32.mrb[0].mxu0
    %v317 = vadd.f32 %v107, %v316
    %v318 = vpop.f32.mrb[0].mxu0
    %v319 = vadd.f32 %v111, %v318
    %v320 = vpop.f32.mrb[0].mxu0
    %v321 = vadd.f32 %v107, %v320
    %v322 = vpop.f32.mrb[0].mxu0
    %v323 = vadd.f32 %v111, %v322
    %324 = vmatprep.mubr.bf16.mxu0 0
    %325 = vmatmul.mubr.bf16.gmra.mrb[0].mxu0 %v71
    %v326 = vpop.f32.mrb[0].mxu0
    %v327 = vadd.f32 %v107, %v326
    %v328 = vpop.f32.mrb[0].mxu0
    %v329 = vadd.f32 %v111, %v328
    %v330 = vpop.f32.mrb[0].mxu0
    %v331 = vadd.f32 %v107, %v330
    %v332 = vpop.f32.mrb[0].mxu0
    %v333 = vadd.f32 %v111, %v332
    %334 = vmatprep.mubr.bf16.mxu0 0
    %335 = vmatmul.mubr.bf16.gmra.mrb[0].mxu0 %v72
    %v336 = vpop.f32.mrb[0].mxu0
    %v337 = vadd.f32 %v107, %v336
    %v338 = vpop.f32.mrb[0].mxu0
    %v339 = vadd.f32 %v111, %v338
    %v340 = vpop.f32.mrb[0].mxu0
    %v341 = vadd.f32 %v107, %v340
    %v342 = vpop.f32.mrb[0].mxu0
    %v343 = vadd.f32 %v111, %v342
    %344 = vmatprep.mubr.bf16.mxu0 0
    %345 = vmatmul.mubr.bf16.gmra.mrb[0].mxu0 %v73
    %v346 = vpop.f32.mrb[0].mxu0
    %v347 = vadd.f32 %v107, %v346
    %v348 = vpop.f32.mrb[0].mxu0
    %v349 = vadd.f32 %v111, %v348
    %v350 = vpop.f32.mrb[0].mxu0
    %v351 = vadd.f32 %v107, %v350
    %v352 = vpop.f32.mrb[0].mxu0
    %v353 = vadd.f32 %v111, %v352
    %354 = vmatprep.mubr.bf16.mxu0 0
    %355 = vmatmul.mubr.bf16.gmra.mrb[0].mxu0 %v74
    %v356 = vpop.f32.mrb[0].mxu0
    %v357 = vadd.f32 %v107, %v356
    %v358 = vpop.f32.mrb[0].mxu0
    %v359 = vadd.f32 %v111, %v358
    %v360 = vpop.f32.mrb[0].mxu0
    %v361 = vadd.f32 %v107, %v360
    %v362 = vpop.f32.mrb[0].mxu0
    %v363 = vadd.f32 %v111, %v362
    %364 = vmatprep.mubr.bf16.mxu0 0
    %365 = vmatmul.mubr.bf16.gmra.mrb[0].mxu0 %v75
    %v366 = vpop.f32.mrb[0].mxu0
    %v367 = vadd.f32 %v107, %v366
    %v368 = vpop.f32.mrb[0].mxu0
    %v369 = vadd.f32 %v111, %v368
    %v370 = vpop.f32.mrb[0].mxu0
    %v371 = vadd.f32 %v107, %v370
    %v372 = vpop.f32.mrb[0].mxu0
    %v373 = vadd.f32 %v111, %v372
    %374 = vmatprep.mubr.bf16.mxu0 0
    %375 = vmatmul.mubr.bf16.gmra.mrb[0].mxu0 %v76
    %v376 = vpop.f32.mrb[0].mxu0
    %v377 = vadd.f32 %v107, %v376
    %v378 = vpop.f32.mrb[0].mxu0
    %v379 = vadd.f32 %v111, %v378
    %v380 = vpop.f32.mrb[0].mxu0
    %v381 = vadd.f32 %v107, %v380
    %v382 = vpop.f32.mrb[0].mxu0
    %v383 = vadd.f32 %v111, %v382
    %384 = vdwg.mxu0
    %v385 = vmax.f32 %v227, 0.0
    %v386 = vmax.f32 %v229, 0.0
    %v387 = vmax.f32 %v231, 0.0
    %v388 = vmax.f32 %v233, 0.0
    %v389 = vmax.f32 %v237, 0.0
    %v390 = vmax.f32 %v239, 0.0
    %v391 = vmax.f32 %v241, 0.0
    %v392 = vmax.f32 %v243, 0.0
    %v393 = vmax.f32 %v247, 0.0
    %v394 = vmax.f32 %v249, 0.0
    %v395 = vmax.f32 %v251, 0.0
    %v396 = vmax.f32 %v253, 0.0
    %v397 = vmax.f32 %v257, 0.0
    %v398 = vmax.f32 %v259, 0.0
    %v399 = vmax.f32 %v261, 0.0
    %v400 = vmax.f32 %v263, 0.0
    %v401 = vmax.f32 %v267, 0.0
    %v402 = vmax.f32 %v269, 0.0
    %v403 = vmax.f32 %v271, 0.0
    %v404 = vmax.f32 %v273, 0.0
    %v405 = vmax.f32 %v277, 0.0
    %v406 = vmax.f32 %v279, 0.0
    %v407 = vmax.f32 %v281, 0.0
    %v408 = vmax.f32 %v283, 0.0
    %v409 = vmax.f32 %v287, 0.0
    %v410 = vmax.f32 %v289, 0.0
    %v411 = vmax.f32 %v291, 0.0
    %v412 = vmax.f32 %v293, 0.0
    %v413 = vmax.f32 %v297, 0.0
    %v414 = vmax.f32 %v299, 0.0
    %v415 = vmax.f32 %v301, 0.0
    %v416 = vmax.f32 %v303, 0.0
    %v417 = vmax.f32 %v307, 0.0
    %v418 = vmax.f32 %v309, 0.0
    %v419 = vmax.f32 %v311, 0.0
    %v420 = vmax.f32 %v313, 0.0
    %v421 = vmax.f32 %v317, 0.0
    %v422 = vmax.f32 %v319, 0.0
    %v423 = vmax.f32 %v321, 0.0
    %v424 = vmax.f32 %v323, 0.0
    %v425 = vmax.f32 %v327, 0.0
    %v426 = vmax.f32 %v329, 0.0
    %v427 = vmax.f32 %v331, 0.0
    %v428 = vmax.f32 %v333, 0.0
    %v429 = vmax.f32 %v337, 0.0
    %v430 = vmax.f32 %v339, 0.0
    %v431 = vmax.f32 %v341, 0.0
    %v432 = vmax.f32 %v343, 0.0
    %v433 = vmax.f32 %v347, 0.0
    %v434 = vmax.f32 %v349, 0.0
    %v435 = vmax.f32 %v351, 0.0
    %v436 = vmax.f32 %v353, 0.0
    %v437 = vmax.f32 %v357, 0.0
    %v438 = vmax.f32 %v359, 0.0
    %v439 = vmax.f32 %v361, 0.0
    %v440 = vmax.f32 %v363, 0.0
    %v441 = vmax.f32 %v367, 0.0
    %v442 = vmax.f32 %v369, 0.0
    %v443 = vmax.f32 %v371, 0.0
    %v444 = vmax.f32 %v373, 0.0
    %v445 = vmax.f32 %v377, 0.0
    %v446 = vmax.f32 %v379, 0.0
    %v447 = vmax.f32 %v381, 0.0
    %v448 = vmax.f32 %v383, 0.0
    %v449 = vadd.f32 %v385, %v387
    %v450 = vadd.f32 %v449, %v389
    %v451 = vadd.f32 %v450, %v391
    %v452 = vadd.f32 %v451, %v393
    %v453 = vadd.f32 %v452, %v395
    %v454 = vadd.f32 %v453, %v397
    %v455 = vadd.f32 %v454, %v399
    %v456 = vadd.f32 %v455, %v401
    %v457 = vadd.f32 %v456, %v403
    %v458 = vadd.f32 %v457, %v405
    %v459 = vadd.f32 %v458, %v407
    %v460 = vadd.f32 %v459, %v409
    %v461 = vadd.f32 %v460, %v411
    %v462 = vadd.f32 %v461, %v413
    %v463 = vadd.f32 %v462, %v415
    %v464 = vadd.f32 %v463, %v417
    %v465 = vadd.f32 %v464, %v419
    %v466 = vadd.f32 %v465, %v421
    %v467 = vadd.f32 %v466, %v423
    %v468 = vadd.f32 %v467, %v425
    %v469 = vadd.f32 %v468, %v427
    %v470 = vadd.f32 %v469, %v429
    %v471 = vadd.f32 %v470, %v431
    %v472 = vadd.f32 %v471, %v433
    %v473 = vadd.f32 %v472, %v435
    %v474 = vadd.f32 %v473, %v437
    %v475 = vadd.f32 %v474, %v439
    %v476 = vadd.f32 %v475, %v441
    %v477 = vadd.f32 %v476, %v443
    %v478 = vadd.f32 %v477, %v445
    %v479 = vadd.f32 %v478, %v447
    %v480 = vrot.slane %v479, 4
    %v481 = vadd.f32 %v479, %v480
    %v482 = vrot.slane %v481, 2
    %v483 = vadd.f32 %v481, %v482
    %v484 = vrot.slane %v483, 1
    %v485 = vadd.f32 %v483, %v484
    %v486 = vadd.f32 %v386, %v388
    %v487 = vadd.f32 %v486, %v390
    %v488 = vadd.f32 %v487, %v392
    %v489 = vadd.f32 %v488, %v394
    %v490 = vadd.f32 %v489, %v396
    %v491 = vadd.f32 %v490, %v398
    %v492 = vadd.f32 %v491, %v400
    %v493 = vadd.f32 %v492, %v402
    %v494 = vadd.f32 %v493, %v404
    %v495 = vadd.f32 %v494, %v406
    %v496 = vadd.f32 %v495, %v408
    %v497 = vadd.f32 %v496, %v410
    %v498 = vadd.f32 %v497, %v412
    %v499 = vadd.f32 %v498, %v414
    %v500 = vadd.f32 %v499, %v416
    %v501 = vadd.f32 %v500, %v418
    %v502 = vadd.f32 %v501, %v420
    %v503 = vadd.f32 %v502, %v422
    %v504 = vadd.f32 %v503, %v424
    %v505 = vadd.f32 %v504, %v426
    %v506 = vadd.f32 %v505, %v428
    %v507 = vadd.f32 %v506, %v430
    %v508 = vadd.f32 %v507, %v432
    %v509 = vadd.f32 %v508, %v434
    %v510 = vadd.f32 %v509, %v436
    %v511 = vadd.f32 %v510, %v438
    %v512 = vadd.f32 %v511, %v440
    %v513 = vadd.f32 %v512, %v442
    %v514 = vadd.f32 %v513, %v444
    %v515 = vadd.f32 %v514, %v446
    %v516 = vadd.f32 %v515, %v448
    %v517 = vrot.slane %v516, 4
    %v518 = vadd.f32 %v516, %v517
    %v519 = vrot.slane %v518, 2
    %v520 = vadd.f32 %v518, %v519
    %v521 = vrot.slane %v520, 1
    %v522 = vadd.f32 %v520, %v521
    %v523 = vmul.f32 %v485, 0.00390625
    %v524 = vmul.f32 %v522, 0.00390625
    %v525 = vmul.f32 %v385, %v385
    %v526 = vmul.f32 %v386, %v386
    %v527 = vmul.f32 %v387, %v387
    %v528 = vmul.f32 %v388, %v388
    %v529 = vmul.f32 %v389, %v389
    %v530 = vmul.f32 %v390, %v390
    %v531 = vmul.f32 %v391, %v391
    %v532 = vmul.f32 %v392, %v392
    %v533 = vmul.f32 %v393, %v393
    %v534 = vmul.f32 %v394, %v394
    %v535 = vmul.f32 %v395, %v395
    %v536 = vmul.f32 %v396, %v396
    %v537 = vmul.f32 %v397, %v397
    %v538 = vmul.f32 %v398, %v398
    %v539 = vmul.f32 %v399, %v399
    %v540 = vmul.f32 %v400, %v400
    %v541 = vmul.f32 %v401, %v401
    %v542 = vmul.f32 %v402, %v402
    %v543 = vmul.f32 %v403, %v403
    %v544 = vmul.f32 %v404, %v404
    %v545 = vmul.f32 %v405, %v405
    %v546 = vmul.f32 %v406, %v406
    %v547 = vmul.f32 %v407, %v407
    %v548 = vmul.f32 %v408, %v408
    %v549 = vmul.f32 %v409, %v409
    %v550 = vmul.f32 %v410, %v410
    %v551 = vmul.f32 %v411, %v411
    %v552 = vmul.f32 %v412, %v412
    %v553 = vmul.f32 %v413, %v413
    %v554 = vmul.f32 %v414, %v414
    %v555 = vmul.f32 %v415, %v415
    %v556 = vmul.f32 %v416, %v416
    %v557 = vmul.f32 %v417, %v417
    %v558 = vmul.f32 %v418, %v418
    %v559 = vmul.f32 %v419, %v419
    %v560 = vmul.f32 %v420, %v420
    %v561 = vmul.f32 %v421, %v421
    %v562 = vmul.f32 %v422, %v422
    %v563 = vmul.f32 %v423, %v423
    %v564 = vmul.f32 %v424, %v424
    %v565 = vmul.f32 %v425, %v425
    %v566 = vmul.f32 %v426, %v426
    %v567 = vmul.f32 %v427, %v427
    %v568 = vmul.f32 %v428, %v428
    %v569 = vmul.f32 %v429, %v429
    %v570 = vmul.f32 %v430, %v430
    %v571 = vmul.f32 %v431, %v431
    %v572 = vmul.f32 %v432, %v432
    %v573 = vmul.f32 %v433, %v433
    %v574 = vmul.f32 %v434, %v434
    %v575 = vmul.f32 %v435, %v435
    %v576 = vmul.f32 %v436, %v436
    %v577 = vmul.f32 %v437, %v437
    %v578 = vmul.f32 %v438, %v438
    %v579 = vmul.f32 %v439, %v439
    %v580 = vmul.f32 %v440, %v440
    %v581 = vmul.f32 %v441, %v441
    %v582 = vmul.f32 %v442, %v442
    %v583 = vmul.f32 %v443, %v443
    %v584 = vmul.f32 %v444, %v444
    %v585 = vmul.f32 %v445, %v445
    %v586 = vmul.f32 %v446, %v446
    %v587 = vmul.f32 %v447, %v447
    %v588 = vmul.f32 %v448, %v448
    %v589 = vadd.f32 %v525, %v527
    %v590 = vadd.f32 %v589, %v529
    %v591 = vadd.f32 %v590, %v531
    %v592 = vadd.f32 %v591, %v533
    %v593 = vadd.f32 %v592, %v535
    %v594 = vadd.f32 %v593, %v537
    %v595 = vadd.f32 %v594, %v539
    %v596 = vadd.f32 %v595, %v541
    %v597 = vadd.f32 %v596, %v543
    %v598 = vadd.f32 %v597, %v545
    %v599 = vadd.f32 %v598, %v547
    %v600 = vadd.f32 %v599, %v549
    %v601 = vadd.f32 %v600, %v551
    %v602 = vadd.f32 %v601, %v553
    %v603 = vadd.f32 %v602, %v555
    %v604 = vadd.f32 %v603, %v557
    %v605 = vadd.f32 %v604, %v559
    %v606 = vadd.f32 %v605, %v561
    %v607 = vadd.f32 %v606, %v563
    %v608 = vadd.f32 %v607, %v565
    %v609 = vadd.f32 %v608, %v567
    %v610 = vadd.f32 %v609, %v569
    %v611 = vadd.f32 %v610, %v571
    %v612 = vadd.f32 %v611, %v573
    %v613 = vadd.f32 %v612, %v575
    %v614 = vadd.f32 %v613, %v577
    %v615 = vadd.f32 %v614, %v579
    %v616 = vadd.f32 %v615, %v581
    %v617 = vadd.f32 %v616, %v583
    %v618 = vadd.f32 %v617, %v585
    %v619 = vadd.f32 %v618, %v587
    %v620 = vrot.slane %v619, 4
    %v621 = vadd.f32 %v619, %v620
    %v622 = vrot.slane %v621, 2
    %v623 = vadd.f32 %v621, %v622
    %v624 = vrot.slane %v623, 1
    %v625 = vadd.f32 %v623, %v624
    %v626 = vadd.f32 %v526, %v528
    %v627 = vadd.f32 %v626, %v530
    %v628 = vadd.f32 %v627, %v532
    %v629 = vadd.f32 %v628, %v534
    %v630 = vadd.f32 %v629, %v536
    %v631 = vadd.f32 %v630, %v538
    %v632 = vadd.f32 %v631, %v540
    %v633 = vadd.f32 %v632, %v542
    %v634 = vadd.f32 %v633, %v544
    %v635 = vadd.f32 %v634, %v546
    %v636 = vadd.f32 %v635, %v548
    %v637 = vadd.f32 %v636, %v550
    %v638 = vadd.f32 %v637, %v552
    %v639 = vadd.f32 %v638, %v554
    %v640 = vadd.f32 %v639, %v556
    %v641 = vadd.f32 %v640, %v558
    %v642 = vadd.f32 %v641, %v560
    %v643 = vadd.f32 %v642, %v562
    %v644 = vadd.f32 %v643, %v564
    %v645 = vadd.f32 %v644, %v566
    %v646 = vadd.f32 %v645, %v568
    %v647 = vadd.f32 %v646, %v570
    %v648 = vadd.f32 %v647, %v572
    %v649 = vadd.f32 %v648, %v574
    %v650 = vadd.f32 %v649, %v576
    %v651 = vadd.f32 %v650, %v578
    %v652 = vadd.f32 %v651, %v580
    %v653 = vadd.f32 %v652, %v582
    %v654 = vadd.f32 %v653, %v584
    %v655 = vadd.f32 %v654, %v586
    %v656 = vadd.f32 %v655, %v588
    %v657 = vrot.slane %v656, 4
    %v658 = vadd.f32 %v656, %v657
    %v659 = vrot.slane %v658, 2
    %v660 = vadd.f32 %v658, %v659
    %v661 = vrot.slane %v660, 1
    %v662 = vadd.f32 %v660, %v661
    %v663 = vmul.f32 %v625, 0.00390625
    %v664 = vmul.f32 %v662, 0.00390625
    %v665 = vmul.f32 %v523, %v523
    %v666 = vmul.f32 %v524, %v524
    %v667 = vsub.f32 %v663, %v665
    %v668 = vsub.f32 %v664, %v666
    %v669 = vmax.f32 %v667, 0.0
    %v670 = vmax.f32 %v668, 0.0
    %v671 = vadd.f32 %v669, 1e-05
    %v672 = vadd.f32 %v670, 1e-05
    %v673 = vrsqrt.pop %v671
    %v674 = vrsqrt.pop %v672
    %v677 = vcombine.low %v673, %v674
    %v678 = vrot.slane %v677, 7
    %v680 = vmul.f32 %v27, %v678
    %v682 = vlaneseq
    %v683 = vshrl.u32 %v682, 7
    %v684 = vsub.s32 1, %v683
    %v685 = vrot.slane %v680, %v684
    %v686 = vlaneseq
    %v687 = vshrl.u32 %v686, 7
    %v688 = vsub.s32 5, %v687
    %v689 = vrot.slane %v680, %v688
    %v692 = vmul.f32 %v523, %v685
    %v693 = vmul.f32 %v524, %v689
    %v696 = vcombine.low %v692, %v693
    %v697 = vrot.slane %v696, 6
    %v699 = vsub.f32 %v27, %v697
    %v700 = vlaneseq
    %v701 = vshrl.u32 %v700, 7
    %v702 = vsub.s32 1, %v701
    %v703 = vrot.slane %v685, %v702
    %v704 = vlaneseq
    %v705 = vshrl.u32 %v704, 7
    %v706 = vsub.s32 1, %v705
    %v707 = vrot.slane %v689, %v706
    %v708 = vmul.f32 %v385, %v703
    %v709 = vmul.f32 %v386, %v707
    %v710 = vmul.f32 %v387, %v703
    %v711 = vmul.f32 %v388, %v707
    %v712 = vmul.f32 %v389, %v703
    %v713 = vmul.f32 %v390, %v707
    %v714 = vmul.f32 %v391, %v703
    %v715 = vmul.f32 %v392, %v707
    %v716 = vmul.f32 %v393, %v703
    %v717 = vmul.f32 %v394, %v707
    %v718 = vmul.f32 %v395, %v703
    %v719 = vmul.f32 %v396, %v707
    %v720 = vmul.f32 %v397, %v703
    %v721 = vmul.f32 %v398, %v707
    %v722 = vmul.f32 %v399, %v703
    %v723 = vmul.f32 %v400, %v707
    %v724 = vmul.f32 %v401, %v703
    %v725 = vmul.f32 %v402, %v707
    %v726 = vmul.f32 %v403, %v703
    %v727 = vmul.f32 %v404, %v707
    %v728 = vmul.f32 %v405, %v703
    %v729 = vmul.f32 %v406, %v707
    %v730 = vmul.f32 %v407, %v703
    %v731 = vmul.f32 %v408, %v707
    %v732 = vmul.f32 %v409, %v703
    %v733 = vmul.f32 %v410, %v707
    %v734 = vmul.f32 %v411, %v703
    %v735 = vmul.f32 %v412, %v707
    %v736 = vmul.f32 %v413, %v703
    %v737 = vmul.f32 %v414, %v707
    %v738 = vmul.f32 %v415, %v703
    %v739 = vmul.f32 %v416, %v707
    %v740 = vmul.f32 %v417, %v703
    %v741 = vmul.f32 %v418, %v707
    %v742 = vmul.f32 %v419, %v703
    %v743 = vmul.f32 %v420, %v707
    %v744 = vmul.f32 %v421, %v703
    %v745 = vmul.f32 %v422, %v707
    %v746 = vmul.f32 %v423, %v703
    %v747 = vmul.f32 %v424, %v707
    %v748 = vmul.f32 %v425, %v703
    %v749 = vmul.f32 %v426, %v707
    %v750 = vmul.f32 %v427, %v703
    %v751 = vmul.f32 %v428, %v707
    %v752 = vmul.f32 %v429, %v703
    %v753 = vmul.f32 %v430, %v707
    %v754 = vmul.f32 %v431, %v703
    %v755 = vmul.f32 %v432, %v707
    %v756 = vmul.f32 %v433, %v703
    %v757 = vmul.f32 %v434, %v707
    %v758 = vmul.f32 %v435, %v703
    %v759 = vmul.f32 %v436, %v707
    %v760 = vmul.f32 %v437, %v703
    %v761 = vmul.f32 %v438, %v707
    %v762 = vmul.f32 %v439, %v703
    %v763 = vmul.f32 %v440, %v707
    %v764 = vmul.f32 %v441, %v703
    %v765 = vmul.f32 %v442, %v707
    %v766 = vmul.f32 %v443, %v703
    %v767 = vmul.f32 %v444, %v707
    %v768 = vmul.f32 %v445, %v703
    %v769 = vmul.f32 %v446, %v707
    %v770 = vmul.f32 %v447, %v703
    %v771 = vmul.f32 %v448, %v707
    %v773 = vlaneseq
    %v774 = vshrl.u32 %v773, 7
    %v775 = vsub.s32 2, %v774
    %v776 = vrot.slane %v699, %v775
    %v777 = vlaneseq
    %v778 = vshrl.u32 %v777, 7
    %v779 = vsub.s32 6, %v778
    %v780 = vrot.slane %v699, %v779
    %v783 = vlaneseq
    %v784 = vshrl.u32 %v783, 7
    %v785 = vsub.s32 2, %v784
    %v786 = vrot.slane %v776, %v785
    %v787 = vlaneseq
    %v788 = vshrl.u32 %v787, 7
    %v789 = vsub.s32 2, %v788
    %v790 = vrot.slane %v780, %v789
    %v791 = vadd.f32 %v708, %v786
    %v792 = vadd.f32 %v709, %v790
    %v793 = vadd.f32 %v710, %v786
    %v794 = vadd.f32 %v711, %v790
    %v795 = vadd.f32 %v712, %v786
    %v796 = vadd.f32 %v713, %v790
    %v797 = vadd.f32 %v714, %v786
    %v798 = vadd.f32 %v715, %v790
    %v799 = vadd.f32 %v716, %v786
    %v800 = vadd.f32 %v717, %v790
    %v801 = vadd.f32 %v718, %v786
    %v802 = vadd.f32 %v719, %v790
    %v803 = vadd.f32 %v720, %v786
    %v804 = vadd.f32 %v721, %v790
    %v805 = vadd.f32 %v722, %v786
    %v806 = vadd.f32 %v723, %v790
    %v807 = vadd.f32 %v724, %v786
    %v808 = vadd.f32 %v725, %v790
    %v809 = vadd.f32 %v726, %v786
    %v810 = vadd.f32 %v727, %v790
    %v811 = vadd.f32 %v728, %v786
    %v812 = vadd.f32 %v729, %v790
    %v813 = vadd.f32 %v730, %v786
    %v814 = vadd.f32 %v731, %v790
    %v815 = vadd.f32 %v732, %v786
    %v816 = vadd.f32 %v733, %v790
    %v817 = vadd.f32 %v734, %v786
    %v818 = vadd.f32 %v735, %v790
    %v819 = vadd.f32 %v736, %v786
    %v820 = vadd.f32 %v737, %v790
    %v821 = vadd.f32 %v738, %v786
    %v822 = vadd.f32 %v739, %v790
    %v823 = vadd.f32 %v740, %v786
    %v824 = vadd.f32 %v741, %v790
    %v825 = vadd.f32 %v742, %v786
    %v826 = vadd.f32 %v743, %v790
    %v827 = vadd.f32 %v744, %v786
    %v828 = vadd.f32 %v745, %v790
    %v829 = vadd.f32 %v746, %v786
    %v830 = vadd.f32 %v747, %v790
    %v831 = vadd.f32 %v748, %v786
    %v832 = vadd.f32 %v749, %v790
    %v833 = vadd.f32 %v750, %v786
    %v834 = vadd.f32 %v751, %v790
    %v835 = vadd.f32 %v752, %v786
    %v836 = vadd.f32 %v753, %v790
    %v837 = vadd.f32 %v754, %v786
    %v838 = vadd.f32 %v755, %v790
    %v839 = vadd.f32 %v756, %v786
    %v840 = vadd.f32 %v757, %v790
    %v841 = vadd.f32 %v758, %v786
    %v842 = vadd.f32 %v759, %v790
    %v843 = vadd.f32 %v760, %v786
    %v844 = vadd.f32 %v761, %v790
    %v845 = vadd.f32 %v762, %v786
    %v846 = vadd.f32 %v763, %v790
    %v847 = vadd.f32 %v764, %v786
    %v848 = vadd.f32 %v765, %v790
    %v849 = vadd.f32 %v766, %v786
    %v850 = vadd.f32 %v767, %v790
    %v851 = vadd.f32 %v768, %v786
    %v852 = vadd.f32 %v769, %v790
    %v853 = vadd.f32 %v770, %v786
    %v854 = vadd.f32 %v771, %v790
    %v855 = vpack.c.bf16 %v793, %v791
    %v856 = vpack.c.bf16 %v794, %v792
    %v857 = vpack.c.bf16 %v797, %v795
    %v858 = vpack.c.bf16 %v798, %v796
    %v859 = vpack.c.bf16 %v801, %v799
    %v860 = vpack.c.bf16 %v802, %v800
    %v861 = vpack.c.bf16 %v805, %v803
    %v862 = vpack.c.bf16 %v806, %v804
    %v863 = vpack.c.bf16 %v809, %v807
    %v864 = vpack.c.bf16 %v810, %v808
    %v865 = vpack.c.bf16 %v813, %v811
    %v866 = vpack.c.bf16 %v814, %v812
    %v867 = vpack.c.bf16 %v817, %v815
    %v868 = vpack.c.bf16 %v818, %v816
    %v869 = vpack.c.bf16 %v821, %v819
    %v870 = vpack.c.bf16 %v822, %v820
    %v871 = vpack.c.bf16 %v825, %v823
    %v872 = vpack.c.bf16 %v826, %v824
    %v873 = vpack.c.bf16 %v829, %v827
    %v874 = vpack.c.bf16 %v830, %v828
    %v875 = vpack.c.bf16 %v833, %v831
    %v876 = vpack.c.bf16 %v834, %v832
    %v877 = vpack.c.bf16 %v837, %v835
    %v878 = vpack.c.bf16 %v838, %v836
    %v879 = vpack.c.bf16 %v841, %v839
    %v880 = vpack.c.bf16 %v842, %v840
    %v881 = vpack.c.bf16 %v845, %v843
    %v882 = vpack.c.bf16 %v846, %v844
    %v883 = vpack.c.bf16 %v849, %v847
    %v884 = vpack.c.bf16 %v850, %v848
    %v885 = vpack.c.bf16 %v853, %v851
    %v886 = vpack.c.bf16 %v854, %v852
    %v887 = vld [vmem:[%s4] sm:$0xf]
    %v888 = vld [vmem:[%s4 + $0x4] sm:$0xf]
    %v889 = vld [vmem:[%s4 + $0x8] sm:$0xf]
    %v890 = vld [vmem:[%s4 + $0xc] sm:$0xf]
    %v891 = vld [vmem:[%s4 + $0x10] sm:$0xf]
    %v892 = vld [vmem:[%s4 + $0x14] sm:$0xf]
    %v893 = vld [vmem:[%s4 + $0x18] sm:$0xf]
    %v894 = vld [vmem:[%s4 + $0x1c] sm:$0xf]
    %v895 = vld [vmem:[%s4 + $0x20] sm:$0xf]
    %v896 = vld [vmem:[%s4 + $0x24] sm:$0xf]
    %v897 = vld [vmem:[%s4 + $0x28] sm:$0xf]
    %v898 = vld [vmem:[%s4 + $0x2c] sm:$0xf]
    %v899 = vld [vmem:[%s4 + $0x30] sm:$0xf]
    %v900 = vld [vmem:[%s4 + $0x34] sm:$0xf]
    %v901 = vld [vmem:[%s4 + $0x38] sm:$0xf]
    %v902 = vld [vmem:[%s4 + $0x3c] sm:$0xf]
    %v903 = vld [vmem:[%s4 + $0x40] sm:$0xf]
    %v904 = vld [vmem:[%s4 + $0x44] sm:$0xf]
    %v905 = vld [vmem:[%s4 + $0x48] sm:$0xf]
    %v906 = vld [vmem:[%s4 + $0x4c] sm:$0xf]
    %v907 = vld [vmem:[%s4 + $0x50] sm:$0xf]
    %v908 = vld [vmem:[%s4 + $0x54] sm:$0xf]
    %v909 = vld [vmem:[%s4 + $0x58] sm:$0xf]
    %v910 = vld [vmem:[%s4 + $0x5c] sm:$0xf]
    %v911 = vld [vmem:[%s4 + $0x60] sm:$0xf]
    %v912 = vld [vmem:[%s4 + $0x64] sm:$0xf]
    %v913 = vld [vmem:[%s4 + $0x68] sm:$0xf]
    %v914 = vld [vmem:[%s4 + $0x6c] sm:$0xf]
    %v915 = vld [vmem:[%s4 + $0x70] sm:$0xf]
    %v916 = vld [vmem:[%s4 + $0x74] sm:$0xf]
    %v917 = vld [vmem:[%s4 + $0x78] sm:$0xf]
    %v918 = vld [vmem:[%s4 + $0x7c] sm:$0xf]
    %v919 = vlaneseq
    %v920 = vshrl.u32 %v919, 7
    %v921 = vsub.s32 0, %v920
    %v922 = vrot.slane %v28, %v921
    %v955 = vunpack.c.l.b16 %v887
    %v956 = vunpack.c.l.b16 %v888
    %v957 = vunpack.c.l.b16 %v889
    %v958 = vunpack.c.l.b16 %v890
    %v959 = vunpack.c.l.b16 %v891
    %v960 = vunpack.c.l.b16 %v892
    %v961 = vunpack.c.l.b16 %v893
    %v962 = vunpack.c.l.b16 %v894
    %v963 = vunpack.c.l.b16 %v895
    %v964 = vunpack.c.l.b16 %v896
    %v965 = vunpack.c.l.b16 %v897
    %v966 = vunpack.c.l.b16 %v898
    %v967 = vunpack.c.l.b16 %v899
    %v968 = vunpack.c.l.b16 %v900
    %v969 = vunpack.c.l.b16 %v901
    %v970 = vunpack.c.l.b16 %v902
    %v971 = vunpack.c.l.b16 %v903
    %v972 = vunpack.c.l.b16 %v904
    %v973 = vunpack.c.l.b16 %v905
    %v974 = vunpack.c.l.b16 %v906
    %v975 = vunpack.c.l.b16 %v907
    %v976 = vunpack.c.l.b16 %v908
    %v977 = vunpack.c.l.b16 %v909
    %v978 = vunpack.c.l.b16 %v910
    %v979 = vunpack.c.l.b16 %v911
    %v980 = vunpack.c.l.b16 %v912
    %v981 = vunpack.c.l.b16 %v913
    %v982 = vunpack.c.l.b16 %v914
    %v983 = vunpack.c.l.b16 %v915
    %v984 = vunpack.c.l.b16 %v916
    %v985 = vunpack.c.l.b16 %v917
    %v986 = vunpack.c.l.b16 %v918
    %v987 = vpack.c.b16 %v956, %v955
    %v988 = vpack.c.b16 %v958, %v957
    %v989 = vpack.c.b16 %v960, %v959
    %v990 = vpack.c.b16 %v962, %v961
    %v991 = vpack.c.b16 %v964, %v963
    %v992 = vpack.c.b16 %v966, %v965
    %v993 = vpack.c.b16 %v968, %v967
    %v994 = vpack.c.b16 %v970, %v969
    %v995 = vpack.c.b16 %v972, %v971
    %v996 = vpack.c.b16 %v974, %v973
    %v997 = vpack.c.b16 %v976, %v975
    %v998 = vpack.c.b16 %v978, %v977
    %v999 = vpack.c.b16 %v980, %v979
    %v1000 = vpack.c.b16 %v982, %v981
    %v1001 = vpack.c.b16 %v984, %v983
    %v1002 = vpack.c.b16 %v986, %v985
    %1019 = vmatprep.subr.bf16.mxu0 0
    %1020 = vmatpush1.bf16.msra.mxu0 %v987
    %1021 = vmatprep.subr.bf16.mxu0 0
    %1022 = vmatpush1.bf16.msra.mxu0 %v988
    %1023 = vmatprep.subr.bf16.mxu0 0
    %1024 = vmatpush1.bf16.msra.mxu0 %v989
    %1025 = vmatprep.subr.bf16.mxu0 0
    %1026 = vmatpush1.bf16.msra.mxu0 %v990
    %1027 = vmatprep.subr.bf16.mxu0 0
    %1028 = vmatpush1.bf16.msra.mxu0 %v991
    %1029 = vmatprep.subr.bf16.mxu0 0
    %1030 = vmatpush1.bf16.msra.mxu0 %v992
    %1031 = vmatprep.subr.bf16.mxu0 0
    %1032 = vmatpush1.bf16.msra.mxu0 %v993
    %1033 = vmatprep.subr.bf16.mxu0 0
    %1034 = vmatpush1.bf16.msra.mxu0 %v994
    %1035 = vmatprep.subr.bf16.mxu0 0
    %1036 = vmatpush1.bf16.msra.mxu0 %v995
    %1037 = vmatprep.subr.bf16.mxu0 0
    %1038 = vmatpush1.bf16.msra.mxu0 %v996
    %1039 = vmatprep.subr.bf16.mxu0 0
    %1040 = vmatpush1.bf16.msra.mxu0 %v997
    %1041 = vmatprep.subr.bf16.mxu0 0
    %1042 = vmatpush1.bf16.msra.mxu0 %v998
    %1043 = vmatprep.subr.bf16.mxu0 0
    %1044 = vmatpush1.bf16.msra.mxu0 %v999
    %1045 = vmatprep.subr.bf16.mxu0 0
    %1046 = vmatpush1.bf16.msra.mxu0 %v1000
    %1047 = vmatprep.subr.bf16.mxu0 0
    %1048 = vmatpush1.bf16.msra.mxu0 %v1001
    %1049 = vmatprep.subr.bf16.mxu0 0
    %1050 = vmatpush1.bf16.msra.mxu0 %v1002
    %1051 = vmatprep.mubr.bf16.mxu0 %v856
    %1052 = vmatmul.mubr.bf16.gmra.mrb[0].mxu0 %v855
    %v1053 = vpop.f32.mrb[0].mxu0
    %v1054 = vadd.f32 %v922, %v1053
    %v1055 = vpop.f32.mrb[0].mxu0
    %v1056 = vpop.f32.mrb[0].mxu0
    %v1057 = vadd.f32 %v922, %v1056
    %v1058 = vpop.f32.mrb[0].mxu0
    %1059 = vmatprep.mubr.bf16.mxu0 %v858
    %1060 = vmatmul.mubr.bf16.gmra.mrb[0].mxu0 %v857
    %v1061 = vpop.f32.mrb[0].mxu0
    %v1062 = vadd.f32 %v922, %v1061
    %v1063 = vpop.f32.mrb[0].mxu0
    %v1064 = vpop.f32.mrb[0].mxu0
    %v1065 = vadd.f32 %v922, %v1064
    %v1066 = vpop.f32.mrb[0].mxu0
    %1067 = vmatprep.mubr.bf16.mxu0 %v860
    %1068 = vmatmul.mubr.bf16.gmra.mrb[0].mxu0 %v859
    %v1069 = vpop.f32.mrb[0].mxu0
    %v1070 = vadd.f32 %v922, %v1069
    %v1071 = vpop.f32.mrb[0].mxu0
    %v1072 = vpop.f32.mrb[0].mxu0
    %v1073 = vadd.f32 %v922, %v1072
    %v1074 = vpop.f32.mrb[0].mxu0
    %1075 = vmatprep.mubr.bf16.mxu0 %v862
    %1076 = vmatmul.mubr.bf16.gmra.mrb[0].mxu0 %v861
    %v1077 = vpop.f32.mrb[0].mxu0
    %v1078 = vadd.f32 %v922, %v1077
    %v1079 = vpop.f32.mrb[0].mxu0
    %v1080 = vpop.f32.mrb[0].mxu0
    %v1081 = vadd.f32 %v922, %v1080
    %v1082 = vpop.f32.mrb[0].mxu0
    %1083 = vmatprep.mubr.bf16.mxu0 %v864
    %1084 = vmatmul.mubr.bf16.gmra.mrb[0].mxu0 %v863
    %v1085 = vpop.f32.mrb[0].mxu0
    %v1086 = vadd.f32 %v922, %v1085
    %v1087 = vpop.f32.mrb[0].mxu0
    %v1088 = vpop.f32.mrb[0].mxu0
    %v1089 = vadd.f32 %v922, %v1088
    %v1090 = vpop.f32.mrb[0].mxu0
    %1091 = vmatprep.mubr.bf16.mxu0 %v866
    %1092 = vmatmul.mubr.bf16.gmra.mrb[0].mxu0 %v865
    %v1093 = vpop.f32.mrb[0].mxu0
    %v1094 = vadd.f32 %v922, %v1093
    %v1095 = vpop.f32.mrb[0].mxu0
    %v1096 = vpop.f32.mrb[0].mxu0
    %v1097 = vadd.f32 %v922, %v1096
    %v1098 = vpop.f32.mrb[0].mxu0
    %1099 = vmatprep.mubr.bf16.mxu0 %v868
    %1100 = vmatmul.mubr.bf16.gmra.mrb[0].mxu0 %v867
    %v1101 = vpop.f32.mrb[0].mxu0
    %v1102 = vadd.f32 %v922, %v1101
    %v1103 = vpop.f32.mrb[0].mxu0
    %v1104 = vpop.f32.mrb[0].mxu0
    %v1105 = vadd.f32 %v922, %v1104
    %v1106 = vpop.f32.mrb[0].mxu0
    %1107 = vmatprep.mubr.bf16.mxu0 %v870
    %1108 = vmatmul.mubr.bf16.gmra.mrb[0].mxu0 %v869
    %v1109 = vpop.f32.mrb[0].mxu0
    %v1110 = vadd.f32 %v922, %v1109
    %v1111 = vpop.f32.mrb[0].mxu0
    %v1112 = vpop.f32.mrb[0].mxu0
    %v1113 = vadd.f32 %v922, %v1112
    %v1114 = vpop.f32.mrb[0].mxu0
    %1115 = vmatprep.mubr.bf16.mxu0 %v872
    %1116 = vmatmul.mubr.bf16.gmra.mrb[0].mxu0 %v871
    %v1117 = vpop.f32.mrb[0].mxu0
    %v1118 = vadd.f32 %v922, %v1117
    %v1119 = vpop.f32.mrb[0].mxu0
    %v1120 = vpop.f32.mrb[0].mxu0
    %v1121 = vadd.f32 %v922, %v1120
    %v1122 = vpop.f32.mrb[0].mxu0
    %1123 = vmatprep.mubr.bf16.mxu0 %v874
    %1124 = vmatmul.mubr.bf16.gmra.mrb[0].mxu0 %v873
    %v1125 = vpop.f32.mrb[0].mxu0
    %v1126 = vadd.f32 %v922, %v1125
    %v1127 = vpop.f32.mrb[0].mxu0
    %v1128 = vpop.f32.mrb[0].mxu0
    %v1129 = vadd.f32 %v922, %v1128
    %v1130 = vpop.f32.mrb[0].mxu0
    %1131 = vmatprep.mubr.bf16.mxu0 %v876
    %1132 = vmatmul.mubr.bf16.gmra.mrb[0].mxu0 %v875
    %v1133 = vpop.f32.mrb[0].mxu0
    %v1134 = vadd.f32 %v922, %v1133
    %v1135 = vpop.f32.mrb[0].mxu0
    %v1136 = vpop.f32.mrb[0].mxu0
    %v1137 = vadd.f32 %v922, %v1136
    %v1138 = vpop.f32.mrb[0].mxu0
    %1139 = vmatprep.mubr.bf16.mxu0 %v878
    %1140 = vmatmul.mubr.bf16.gmra.mrb[0].mxu0 %v877
    %v1141 = vpop.f32.mrb[0].mxu0
    %v1142 = vadd.f32 %v922, %v1141
    %v1143 = vpop.f32.mrb[0].mxu0
    %v1144 = vpop.f32.mrb[0].mxu0
    %v1145 = vadd.f32 %v922, %v1144
    %v1146 = vpop.f32.mrb[0].mxu0
    %1147 = vmatprep.mubr.bf16.mxu0 %v880
    %1148 = vmatmul.mubr.bf16.gmra.mrb[0].mxu0 %v879
    %v1149 = vpop.f32.mrb[0].mxu0
    %v1150 = vadd.f32 %v922, %v1149
    %v1151 = vpop.f32.mrb[0].mxu0
    %v1152 = vpop.f32.mrb[0].mxu0
    %v1153 = vadd.f32 %v922, %v1152
    %v1154 = vpop.f32.mrb[0].mxu0
    %1155 = vmatprep.mubr.bf16.mxu0 %v882
    %1156 = vmatmul.mubr.bf16.gmra.mrb[0].mxu0 %v881
    %v1157 = vpop.f32.mrb[0].mxu0
    %v1158 = vadd.f32 %v922, %v1157
    %v1159 = vpop.f32.mrb[0].mxu0
    %v1160 = vpop.f32.mrb[0].mxu0
    %v1161 = vadd.f32 %v922, %v1160
    %v1162 = vpop.f32.mrb[0].mxu0
    %1163 = vmatprep.mubr.bf16.mxu0 %v884
    %1164 = vmatmul.mubr.bf16.gmra.mrb[0].mxu0 %v883
    %v1165 = vpop.f32.mrb[0].mxu0
    %v1166 = vadd.f32 %v922, %v1165
    %v1167 = vpop.f32.mrb[0].mxu0
    %v1168 = vpop.f32.mrb[0].mxu0
    %v1169 = vadd.f32 %v922, %v1168
    %v1170 = vpop.f32.mrb[0].mxu0
    %1171 = vmatprep.mubr.bf16.mxu0 %v886
    %1172 = vmatmul.mubr.bf16.gmra.mrb[0].mxu0 %v885
    %v1173 = vpop.f32.mrb[0].mxu0
    %v1174 = vadd.f32 %v922, %v1173
    %v1175 = vpop.f32.mrb[0].mxu0
    %v1176 = vpop.f32.mrb[0].mxu0
    %v1177 = vadd.f32 %v922, %v1176
    %v1178 = vpop.f32.mrb[0].mxu0
    %1179 = vdwg.mxu0
    %v1180 = vmax.f32 %v1054, 0.0
    %v1181 = vmax.f32 %v1057, 0.0
    %v1182 = vmax.f32 %v1062, 0.0
    %v1183 = vmax.f32 %v1065, 0.0
    %v1184 = vmax.f32 %v1070, 0.0
    %v1185 = vmax.f32 %v1073, 0.0
    %v1186 = vmax.f32 %v1078, 0.0
    %v1187 = vmax.f32 %v1081, 0.0
    %v1188 = vmax.f32 %v1086, 0.0
    %v1189 = vmax.f32 %v1089, 0.0
    %v1190 = vmax.f32 %v1094, 0.0
    %v1191 = vmax.f32 %v1097, 0.0
    %v1192 = vmax.f32 %v1102, 0.0
    %v1193 = vmax.f32 %v1105, 0.0
    %v1194 = vmax.f32 %v1110, 0.0
    %v1195 = vmax.f32 %v1113, 0.0
    %v1196 = vmax.f32 %v1118, 0.0
    %v1197 = vmax.f32 %v1121, 0.0
    %v1198 = vmax.f32 %v1126, 0.0
    %v1199 = vmax.f32 %v1129, 0.0
    %v1200 = vmax.f32 %v1134, 0.0
    %v1201 = vmax.f32 %v1137, 0.0
    %v1202 = vmax.f32 %v1142, 0.0
    %v1203 = vmax.f32 %v1145, 0.0
    %v1204 = vmax.f32 %v1150, 0.0
    %v1205 = vmax.f32 %v1153, 0.0
    %v1206 = vmax.f32 %v1158, 0.0
    %v1207 = vmax.f32 %v1161, 0.0
    %v1208 = vmax.f32 %v1166, 0.0
    %v1209 = vmax.f32 %v1169, 0.0
    %v1210 = vmax.f32 %v1174, 0.0
    %v1211 = vmax.f32 %v1177, 0.0
    %vm1212 = vcmask 523264
    %v1213 = vsel %vm1212, %v1180, 0.0
    %v1214 = vsel %vm1212, %v1181, 0.0
    %v1215 = vadd.f32 %v1213, %v1214
    %v1216 = vsel %vm1212, %v1182, 0.0
    %v1217 = vadd.f32 %v1215, %v1216
    %v1218 = vsel %vm1212, %v1183, 0.0
    %v1219 = vadd.f32 %v1217, %v1218
    %v1220 = vsel %vm1212, %v1184, 0.0
    %v1221 = vadd.f32 %v1219, %v1220
    %v1222 = vsel %vm1212, %v1185, 0.0
    %v1223 = vadd.f32 %v1221, %v1222
    %v1224 = vsel %vm1212, %v1186, 0.0
    %v1225 = vadd.f32 %v1223, %v1224
    %v1226 = vsel %vm1212, %v1187, 0.0
    %v1227 = vadd.f32 %v1225, %v1226
    %v1228 = vsel %vm1212, %v1188, 0.0
    %v1229 = vadd.f32 %v1227, %v1228
    %v1230 = vsel %vm1212, %v1189, 0.0
    %v1231 = vadd.f32 %v1229, %v1230
    %v1232 = vsel %vm1212, %v1190, 0.0
    %v1233 = vadd.f32 %v1231, %v1232
    %v1234 = vsel %vm1212, %v1191, 0.0
    %v1235 = vadd.f32 %v1233, %v1234
    %v1236 = vsel %vm1212, %v1192, 0.0
    %v1237 = vadd.f32 %v1235, %v1236
    %v1238 = vsel %vm1212, %v1193, 0.0
    %v1239 = vadd.f32 %v1237, %v1238
    %v1240 = vsel %vm1212, %v1194, 0.0
    %v1241 = vadd.f32 %v1239, %v1240
    %v1242 = vsel %vm1212, %v1195, 0.0
    %v1243 = vadd.f32 %v1241, %v1242
    %v1244 = vsel %vm1212, %v1196, 0.0
    %v1245 = vadd.f32 %v1243, %v1244
    %v1246 = vsel %vm1212, %v1197, 0.0
    %v1247 = vadd.f32 %v1245, %v1246
    %v1248 = vsel %vm1212, %v1198, 0.0
    %v1249 = vadd.f32 %v1247, %v1248
    %v1250 = vsel %vm1212, %v1199, 0.0
    %v1251 = vadd.f32 %v1249, %v1250
    %v1252 = vsel %vm1212, %v1200, 0.0
    %v1253 = vadd.f32 %v1251, %v1252
    %v1254 = vsel %vm1212, %v1201, 0.0
    %v1255 = vadd.f32 %v1253, %v1254
    %v1256 = vsel %vm1212, %v1202, 0.0
    %v1257 = vadd.f32 %v1255, %v1256
    %v1258 = vsel %vm1212, %v1203, 0.0
    %v1259 = vadd.f32 %v1257, %v1258
    %v1260 = vsel %vm1212, %v1204, 0.0
    %v1261 = vadd.f32 %v1259, %v1260
    %v1262 = vsel %vm1212, %v1205, 0.0
    %v1263 = vadd.f32 %v1261, %v1262
    %v1264 = vsel %vm1212, %v1206, 0.0
    %v1265 = vadd.f32 %v1263, %v1264
    %v1266 = vsel %vm1212, %v1207, 0.0
    %v1267 = vadd.f32 %v1265, %v1266
    %v1268 = vsel %vm1212, %v1208, 0.0
    %v1269 = vadd.f32 %v1267, %v1268
    %v1270 = vsel %vm1212, %v1209, 0.0
    %v1271 = vadd.f32 %v1269, %v1270
    %v1272 = vsel %vm1212, %v1210, 0.0
    %v1273 = vadd.f32 %v1271, %v1272
    %v1274 = vsel %vm1212, %v1211, 0.0
    %v1275 = vadd.f32 %v1273, %v1274
    %v1276 = vrot.slane %v1275, 4
    %v1277 = vadd.f32 %v1275, %v1276
    %v1278 = vrot.slane %v1277, 2
    %v1279 = vadd.f32 %v1277, %v1278
    %v1280 = vrot.slane %v1279, 1
    %v1281 = vadd.f32 %v1279, %v1280
    %v1282 = vmul.f32 %v1281, 0.00390625
    %v1283 = vmul.f32 %v1180, %v1180
    %v1284 = vmul.f32 %v1181, %v1181
    %v1285 = vmul.f32 %v1182, %v1182
    %v1286 = vmul.f32 %v1183, %v1183
    %v1287 = vmul.f32 %v1184, %v1184
    %v1288 = vmul.f32 %v1185, %v1185
    %v1289 = vmul.f32 %v1186, %v1186
    %v1290 = vmul.f32 %v1187, %v1187
    %v1291 = vmul.f32 %v1188, %v1188
    %v1292 = vmul.f32 %v1189, %v1189
    %v1293 = vmul.f32 %v1190, %v1190
    %v1294 = vmul.f32 %v1191, %v1191
    %v1295 = vmul.f32 %v1192, %v1192
    %v1296 = vmul.f32 %v1193, %v1193
    %v1297 = vmul.f32 %v1194, %v1194
    %v1298 = vmul.f32 %v1195, %v1195
    %v1299 = vmul.f32 %v1196, %v1196
    %v1300 = vmul.f32 %v1197, %v1197
    %v1301 = vmul.f32 %v1198, %v1198
    %v1302 = vmul.f32 %v1199, %v1199
    %v1303 = vmul.f32 %v1200, %v1200
    %v1304 = vmul.f32 %v1201, %v1201
    %v1305 = vmul.f32 %v1202, %v1202
    %v1306 = vmul.f32 %v1203, %v1203
    %v1307 = vmul.f32 %v1204, %v1204
    %v1308 = vmul.f32 %v1205, %v1205
    %v1309 = vmul.f32 %v1206, %v1206
    %v1310 = vmul.f32 %v1207, %v1207
    %v1311 = vmul.f32 %v1208, %v1208
    %v1312 = vmul.f32 %v1209, %v1209
    %v1313 = vmul.f32 %v1210, %v1210
    %v1314 = vmul.f32 %v1211, %v1211
    %v1315 = vsel %vm1212, %v1283, 0.0
    %v1316 = vsel %vm1212, %v1284, 0.0
    %v1317 = vadd.f32 %v1315, %v1316
    %v1318 = vsel %vm1212, %v1285, 0.0
    %v1319 = vadd.f32 %v1317, %v1318
    %v1320 = vsel %vm1212, %v1286, 0.0
    %v1321 = vadd.f32 %v1319, %v1320
    %v1322 = vsel %vm1212, %v1287, 0.0
    %v1323 = vadd.f32 %v1321, %v1322
    %v1324 = vsel %vm1212, %v1288, 0.0
    %v1325 = vadd.f32 %v1323, %v1324
    %v1326 = vsel %vm1212, %v1289, 0.0
    %v1327 = vadd.f32 %v1325, %v1326
    %v1328 = vsel %vm1212, %v1290, 0.0
    %v1329 = vadd.f32 %v1327, %v1328
    %v1330 = vsel %vm1212, %v1291, 0.0
    %v1331 = vadd.f32 %v1329, %v1330
    %v1332 = vsel %vm1212, %v1292, 0.0
    %v1333 = vadd.f32 %v1331, %v1332
    %v1334 = vsel %vm1212, %v1293, 0.0
    %v1335 = vadd.f32 %v1333, %v1334
    %v1336 = vsel %vm1212, %v1294, 0.0
    %v1337 = vadd.f32 %v1335, %v1336
    %v1338 = vsel %vm1212, %v1295, 0.0
    %v1339 = vadd.f32 %v1337, %v1338
    %v1340 = vsel %vm1212, %v1296, 0.0
    %v1341 = vadd.f32 %v1339, %v1340
    %v1342 = vsel %vm1212, %v1297, 0.0
    %v1343 = vadd.f32 %v1341, %v1342
    %v1344 = vsel %vm1212, %v1298, 0.0
    %v1345 = vadd.f32 %v1343, %v1344
    %v1346 = vsel %vm1212, %v1299, 0.0
    %v1347 = vadd.f32 %v1345, %v1346
    %v1348 = vsel %vm1212, %v1300, 0.0
    %v1349 = vadd.f32 %v1347, %v1348
    %v1350 = vsel %vm1212, %v1301, 0.0
    %v1351 = vadd.f32 %v1349, %v1350
    %v1352 = vsel %vm1212, %v1302, 0.0
    %v1353 = vadd.f32 %v1351, %v1352
    %v1354 = vsel %vm1212, %v1303, 0.0
    %v1355 = vadd.f32 %v1353, %v1354
    %v1356 = vsel %vm1212, %v1304, 0.0
    %v1357 = vadd.f32 %v1355, %v1356
    %v1358 = vsel %vm1212, %v1305, 0.0
    %v1359 = vadd.f32 %v1357, %v1358
    %v1360 = vsel %vm1212, %v1306, 0.0
    %v1361 = vadd.f32 %v1359, %v1360
    %v1362 = vsel %vm1212, %v1307, 0.0
    %v1363 = vadd.f32 %v1361, %v1362
    %v1364 = vsel %vm1212, %v1308, 0.0
    %v1365 = vadd.f32 %v1363, %v1364
    %v1366 = vsel %vm1212, %v1309, 0.0
    %v1367 = vadd.f32 %v1365, %v1366
    %v1368 = vsel %vm1212, %v1310, 0.0
    %v1369 = vadd.f32 %v1367, %v1368
    %v1370 = vsel %vm1212, %v1311, 0.0
    %v1371 = vadd.f32 %v1369, %v1370
    %v1372 = vsel %vm1212, %v1312, 0.0
    %v1373 = vadd.f32 %v1371, %v1372
    %v1374 = vsel %vm1212, %v1313, 0.0
    %v1375 = vadd.f32 %v1373, %v1374
    %v1376 = vsel %vm1212, %v1314, 0.0
    %v1377 = vadd.f32 %v1375, %v1376
    %v1378 = vrot.slane %v1377, 4
    %v1379 = vadd.f32 %v1377, %v1378
    %v1380 = vrot.slane %v1379, 2
    %v1381 = vadd.f32 %v1379, %v1380
    %v1382 = vrot.slane %v1381, 1
    %v1383 = vadd.f32 %v1381, %v1382
    %v1384 = vmul.f32 %v1383, 0.00390625
    %v1385 = vmul.f32 %v1282, %v1282
    %v1386 = vsub.f32 %v1384, %v1385
    %v1387 = vmax.f32 %v1386, 0.0
    %v1388 = vadd.f32 %v1387, 1e-05
    %v1389 = vrsqrt.pop %v1388
    %v1390 = vmul.f32 %v28, %v1389
    %v1391 = vmul.f32 %v1282, %v1390
    %v1393 = vrot.slane %v1391, 7
    %v1395 = vsub.f32 %v28, %v1393
    %v1397 = vrot.slane %v1390, 5
    %v1399 = vmul.f32 %v28, %v1397
    %v1401 = vrot.slane %v1395, 6
    %v1403 = vmul.f32 %v28, %v1401
    %vm1404 = vcmask 520196
    %v1405 = vsel %vm1404, %v1403, 0.0
    %1406 = vadd.xlane.f32.xlu0 %v1405
    %v1407 = vpop.xlane.xlu0 %1406
    %v1408 = vlaneseq
    %v1409 = vshrl.u32 %v1408, 7
    %v1410 = vsub.s32 4, %v1409
    %v1411 = vrot.slane %v1399, %v1410
    %v1412 = vmul.f32 %v1180, %v1411
    %v1413 = vmul.f32 %v1181, %v1411
    %v1414 = vmul.f32 %v1182, %v1411
    %v1415 = vmul.f32 %v1183, %v1411
    %v1416 = vmul.f32 %v1184, %v1411
    %v1417 = vmul.f32 %v1185, %v1411
    %v1418 = vmul.f32 %v1186, %v1411
    %v1419 = vmul.f32 %v1187, %v1411
    %v1420 = vmul.f32 %v1188, %v1411
    %v1421 = vmul.f32 %v1189, %v1411
    %v1422 = vmul.f32 %v1190, %v1411
    %v1423 = vmul.f32 %v1191, %v1411
    %v1424 = vmul.f32 %v1192, %v1411
    %v1425 = vmul.f32 %v1193, %v1411
    %v1426 = vmul.f32 %v1194, %v1411
    %v1427 = vmul.f32 %v1195, %v1411
    %v1428 = vmul.f32 %v1196, %v1411
    %v1429 = vmul.f32 %v1197, %v1411
    %v1430 = vmul.f32 %v1198, %v1411
    %v1431 = vmul.f32 %v1199, %v1411
    %v1432 = vmul.f32 %v1200, %v1411
    %v1433 = vmul.f32 %v1201, %v1411
    %v1434 = vmul.f32 %v1202, %v1411
    %v1435 = vmul.f32 %v1203, %v1411
    %v1436 = vmul.f32 %v1204, %v1411
    %v1437 = vmul.f32 %v1205, %v1411
    %v1438 = vmul.f32 %v1206, %v1411
    %v1439 = vmul.f32 %v1207, %v1411
    %v1440 = vmul.f32 %v1208, %v1411
    %v1441 = vmul.f32 %v1209, %v1411
    %v1442 = vmul.f32 %v1210, %v1411
    %v1443 = vmul.f32 %v1211, %v1411
    %v1444 = vsel %vm1212, %v1412, 0.0
    %1445 = vadd.xlane.f32.xlu0 %v1444
    %v1446 = vpop.xlane.xlu0 %1445
    %v1447 = vsel %vm1212, %v1413, 0.0
    %1448 = vadd.xlane.f32.xlu0 %v1447
    %v1449 = vpop.xlane.xlu0 %1448
    %v1450 = vsel %vm1212, %v1414, 0.0
    %1451 = vadd.xlane.f32.xlu0 %v1450
    %v1452 = vpop.xlane.xlu0 %1451
    %v1453 = vsel %vm1212, %v1415, 0.0
    %1454 = vadd.xlane.f32.xlu0 %v1453
    %v1455 = vpop.xlane.xlu0 %1454
    %v1456 = vsel %vm1212, %v1416, 0.0
    %1457 = vadd.xlane.f32.xlu0 %v1456
    %v1458 = vpop.xlane.xlu0 %1457
    %v1459 = vsel %vm1212, %v1417, 0.0
    %1460 = vadd.xlane.f32.xlu0 %v1459
    %v1461 = vpop.xlane.xlu0 %1460
    %v1462 = vsel %vm1212, %v1418, 0.0
    %1463 = vadd.xlane.f32.xlu0 %v1462
    %v1464 = vpop.xlane.xlu0 %1463
    %v1465 = vsel %vm1212, %v1419, 0.0
    %1466 = vadd.xlane.f32.xlu0 %v1465
    %v1467 = vpop.xlane.xlu0 %1466
    %v1468 = vsel %vm1212, %v1420, 0.0
    %1469 = vadd.xlane.f32.xlu0 %v1468
    %v1470 = vpop.xlane.xlu0 %1469
    %v1471 = vsel %vm1212, %v1421, 0.0
    %1472 = vadd.xlane.f32.xlu0 %v1471
    %v1473 = vpop.xlane.xlu0 %1472
    %v1474 = vsel %vm1212, %v1422, 0.0
    %1475 = vadd.xlane.f32.xlu0 %v1474
    %v1476 = vpop.xlane.xlu0 %1475
    %v1477 = vsel %vm1212, %v1423, 0.0
    %1478 = vadd.xlane.f32.xlu0 %v1477
    %v1479 = vpop.xlane.xlu0 %1478
    %v1480 = vsel %vm1212, %v1424, 0.0
    %1481 = vadd.xlane.f32.xlu0 %v1480
    %v1482 = vpop.xlane.xlu0 %1481
    %v1483 = vsel %vm1212, %v1425, 0.0
    %1484 = vadd.xlane.f32.xlu0 %v1483
    %v1485 = vpop.xlane.xlu0 %1484
    %v1486 = vsel %vm1212, %v1426, 0.0
    %1487 = vadd.xlane.f32.xlu0 %v1486
    %v1488 = vpop.xlane.xlu0 %1487
    %v1489 = vsel %vm1212, %v1427, 0.0
    %1490 = vadd.xlane.f32.xlu0 %v1489
    %v1491 = vpop.xlane.xlu0 %1490
    %v1492 = vsel %vm1212, %v1428, 0.0
    %1493 = vadd.xlane.f32.xlu0 %v1492
    %v1494 = vpop.xlane.xlu0 %1493
    %v1495 = vsel %vm1212, %v1429, 0.0
    %1496 = vadd.xlane.f32.xlu0 %v1495
    %v1497 = vpop.xlane.xlu0 %1496
    %v1498 = vsel %vm1212, %v1430, 0.0
    %1499 = vadd.xlane.f32.xlu0 %v1498
    %v1500 = vpop.xlane.xlu0 %1499
    %v1501 = vsel %vm1212, %v1431, 0.0
    %1502 = vadd.xlane.f32.xlu0 %v1501
    %v1503 = vpop.xlane.xlu0 %1502
    %v1504 = vsel %vm1212, %v1432, 0.0
    %1505 = vadd.xlane.f32.xlu0 %v1504
    %v1506 = vpop.xlane.xlu0 %1505
    %v1507 = vsel %vm1212, %v1433, 0.0
    %1508 = vadd.xlane.f32.xlu0 %v1507
    %v1509 = vpop.xlane.xlu0 %1508
    %v1510 = vsel %vm1212, %v1434, 0.0
    %1511 = vadd.xlane.f32.xlu0 %v1510
    %v1512 = vpop.xlane.xlu0 %1511
    %v1513 = vsel %vm1212, %v1435, 0.0
    %1514 = vadd.xlane.f32.xlu0 %v1513
    %v1515 = vpop.xlane.xlu0 %1514
    %v1516 = vsel %vm1212, %v1436, 0.0
    %1517 = vadd.xlane.f32.xlu0 %v1516
    %v1518 = vpop.xlane.xlu0 %1517
    %v1519 = vsel %vm1212, %v1437, 0.0
    %1520 = vadd.xlane.f32.xlu0 %v1519
    %v1521 = vpop.xlane.xlu0 %1520
    %v1522 = vsel %vm1212, %v1438, 0.0
    %1523 = vadd.xlane.f32.xlu0 %v1522
    %v1524 = vpop.xlane.xlu0 %1523
    %v1525 = vsel %vm1212, %v1439, 0.0
    %1526 = vadd.xlane.f32.xlu0 %v1525
    %v1527 = vpop.xlane.xlu0 %1526
    %v1528 = vsel %vm1212, %v1440, 0.0
    %1529 = vadd.xlane.f32.xlu0 %v1528
    %v1530 = vpop.xlane.xlu0 %1529
    %v1531 = vsel %vm1212, %v1441, 0.0
    %1532 = vadd.xlane.f32.xlu0 %v1531
    %v1533 = vpop.xlane.xlu0 %1532
    %v1534 = vsel %vm1212, %v1442, 0.0
    %1535 = vadd.xlane.f32.xlu0 %v1534
    %v1536 = vpop.xlane.xlu0 %1535
    %v1537 = vsel %vm1212, %v1443, 0.0
    %1538 = vadd.xlane.f32.xlu0 %v1537
    %v1539 = vpop.xlane.xlu0 %1538
    %v1540 = vlaneseq
    %v1541 = vshrl.u32 %v1540, 7
    %v1542 = vsub.s32 4, %v1541
    %v1543 = vrot.slane %v1407, %v1542
    %v1544 = vadd.f32 %v1446, %v1543
    %v1545 = vadd.f32 %v1449, %v1543
    %v1546 = vadd.f32 %v1452, %v1543
    %v1547 = vadd.f32 %v1455, %v1543
    %v1548 = vadd.f32 %v1458, %v1543
    %v1549 = vadd.f32 %v1461, %v1543
    %v1550 = vadd.f32 %v1464, %v1543
    %v1551 = vadd.f32 %v1467, %v1543
    %v1552 = vadd.f32 %v1470, %v1543
    %v1553 = vadd.f32 %v1473, %v1543
    %v1554 = vadd.f32 %v1476, %v1543
    %v1555 = vadd.f32 %v1479, %v1543
    %v1556 = vadd.f32 %v1482, %v1543
    %v1557 = vadd.f32 %v1485, %v1543
    %v1558 = vadd.f32 %v1488, %v1543
    %v1559 = vadd.f32 %v1491, %v1543
    %v1560 = vadd.f32 %v1494, %v1543
    %v1561 = vadd.f32 %v1497, %v1543
    %v1562 = vadd.f32 %v1500, %v1543
    %v1563 = vadd.f32 %v1503, %v1543
    %v1564 = vadd.f32 %v1506, %v1543
    %v1565 = vadd.f32 %v1509, %v1543
    %v1566 = vadd.f32 %v1512, %v1543
    %v1567 = vadd.f32 %v1515, %v1543
    %v1568 = vadd.f32 %v1518, %v1543
    %v1569 = vadd.f32 %v1521, %v1543
    %v1570 = vadd.f32 %v1524, %v1543
    %v1571 = vadd.f32 %v1527, %v1543
    %v1572 = vadd.f32 %v1530, %v1543
    %v1573 = vadd.f32 %v1533, %v1543
    %v1574 = vadd.f32 %v1536, %v1543
    %v1575 = vadd.f32 %v1539, %v1543
    %v1576 = vlaneseq
    %v1577 = vshrl.u32 %v1576, 7
    %v1578 = vsub.s32 3, %v1577
    %v1579 = vrot.slane %v28, %v1578
    %v1580 = vadd.f32 %v1544, %v1579
    %v1581 = vadd.f32 %v1545, %v1579
    %v1582 = vadd.f32 %v1546, %v1579
    %v1583 = vadd.f32 %v1547, %v1579
    %v1584 = vadd.f32 %v1548, %v1579
    %v1585 = vadd.f32 %v1549, %v1579
    %v1586 = vadd.f32 %v1550, %v1579
    %v1587 = vadd.f32 %v1551, %v1579
    %v1588 = vadd.f32 %v1552, %v1579
    %v1589 = vadd.f32 %v1553, %v1579
    %v1590 = vadd.f32 %v1554, %v1579
    %v1591 = vadd.f32 %v1555, %v1579
    %v1592 = vadd.f32 %v1556, %v1579
    %v1593 = vadd.f32 %v1557, %v1579
    %v1594 = vadd.f32 %v1558, %v1579
    %v1595 = vadd.f32 %v1559, %v1579
    %v1596 = vadd.f32 %v1560, %v1579
    %v1597 = vadd.f32 %v1561, %v1579
    %v1598 = vadd.f32 %v1562, %v1579
    %v1599 = vadd.f32 %v1563, %v1579
    %v1600 = vadd.f32 %v1564, %v1579
    %v1601 = vadd.f32 %v1565, %v1579
    %v1602 = vadd.f32 %v1566, %v1579
    %v1603 = vadd.f32 %v1567, %v1579
    %v1604 = vadd.f32 %v1568, %v1579
    %v1605 = vadd.f32 %v1569, %v1579
    %v1606 = vadd.f32 %v1570, %v1579
    %v1607 = vadd.f32 %v1571, %v1579
    %v1608 = vadd.f32 %v1572, %v1579
    %v1609 = vadd.f32 %v1573, %v1579
    %v1610 = vadd.f32 %v1574, %v1579
    %v1611 = vadd.f32 %v1575, %v1579
    %vm1612 = vcmask 7168
    %1613 = vst.msk [vmem:[%s7] sm:$0xff] %vm1612, %v1580
    %1614 = vst.msk [vmem:[%s7 + $0x8] sm:$0xff] %vm1612, %v1581
    %1615 = vst.msk [vmem:[%s7 + $0x10] sm:$0xff] %vm1612, %v1582
    %1616 = vst.msk [vmem:[%s7 + $0x18] sm:$0xff] %vm1612, %v1583
    %1617 = vst.msk [vmem:[%s7 + $0x20] sm:$0xff] %vm1612, %v1584
    %1618 = vst.msk [vmem:[%s7 + $0x28] sm:$0xff] %vm1612, %v1585
    %1619 = vst.msk [vmem:[%s7 + $0x30] sm:$0xff] %vm1612, %v1586
    %1620 = vst.msk [vmem:[%s7 + $0x38] sm:$0xff] %vm1612, %v1587
    %1621 = vst.msk [vmem:[%s7 + $0x40] sm:$0xff] %vm1612, %v1588
    %1622 = vst.msk [vmem:[%s7 + $0x48] sm:$0xff] %vm1612, %v1589
    %1623 = vst.msk [vmem:[%s7 + $0x50] sm:$0xff] %vm1612, %v1590
    %1624 = vst.msk [vmem:[%s7 + $0x58] sm:$0xff] %vm1612, %v1591
    %1625 = vst.msk [vmem:[%s7 + $0x60] sm:$0xff] %vm1612, %v1592
    %1626 = vst.msk [vmem:[%s7 + $0x68] sm:$0xff] %vm1612, %v1593
    %1627 = vst.msk [vmem:[%s7 + $0x70] sm:$0xff] %vm1612, %v1594
    %1628 = vst.msk [vmem:[%s7 + $0x78] sm:$0xff] %vm1612, %v1595
    %1629 = vst.msk [vmem:[%s7 + $0x80] sm:$0xff] %vm1612, %v1596
    %1630 = vst.msk [vmem:[%s7 + $0x88] sm:$0xff] %vm1612, %v1597
    %1631 = vst.msk [vmem:[%s7 + $0x90] sm:$0xff] %vm1612, %v1598
    %1632 = vst.msk [vmem:[%s7 + $0x98] sm:$0xff] %vm1612, %v1599
    %1633 = vst.msk [vmem:[%s7 + $0xa0] sm:$0xff] %vm1612, %v1600
    %1634 = vst.msk [vmem:[%s7 + $0xa8] sm:$0xff] %vm1612, %v1601
    %1635 = vst.msk [vmem:[%s7 + $0xb0] sm:$0xff] %vm1612, %v1602
    %1636 = vst.msk [vmem:[%s7 + $0xb8] sm:$0xff] %vm1612, %v1603
    %1637 = vst.msk [vmem:[%s7 + $0xc0] sm:$0xff] %vm1612, %v1604
    %1638 = vst.msk [vmem:[%s7 + $0xc8] sm:$0xff] %vm1612, %v1605
    %1639 = vst.msk [vmem:[%s7 + $0xd0] sm:$0xff] %vm1612, %v1606
    %1640 = vst.msk [vmem:[%s7 + $0xd8] sm:$0xff] %vm1612, %v1607
    %1641 = vst.msk [vmem:[%s7 + $0xe0] sm:$0xff] %vm1612, %v1608
    %1642 = vst.msk [vmem:[%s7 + $0xe8] sm:$0xff] %vm1612, %v1609
    %1643 = vst.msk [vmem:[%s7 + $0xf0] sm:$0xff] %vm1612, %v1610
    %1644 = vst.msk [vmem:[%s7 + $0xf8] sm:$0xff] %vm1612, %v1611
    %v1645 = vld [vmem:[%s1] sm:$0xff]
    %v1646 = vld [vmem:[%s1 + $0x8] sm:$0xff]
    %v1647 = vld [vmem:[%s1 + $0x10] sm:$0xff]
    %v1648 = vld [vmem:[%s1 + $0x18] sm:$0xff]
    %v1649 = vld [vmem:[%s1 + $0x20] sm:$0xff]
    %v1650 = vld [vmem:[%s1 + $0x28] sm:$0xff]
    %v1651 = vld [vmem:[%s1 + $0x30] sm:$0xff]
    %v1652 = vld [vmem:[%s1 + $0x38] sm:$0xff]
    %v1653 = vld [vmem:[%s1 + $0x40] sm:$0xff]
    %v1654 = vld [vmem:[%s1 + $0x48] sm:$0xff]
    %v1655 = vld [vmem:[%s1 + $0x50] sm:$0xff]
    %v1656 = vld [vmem:[%s1 + $0x58] sm:$0xff]
    %v1657 = vld [vmem:[%s1 + $0x60] sm:$0xff]
    %v1658 = vld [vmem:[%s1 + $0x68] sm:$0xff]
    %v1659 = vld [vmem:[%s1 + $0x70] sm:$0xff]
    %v1660 = vld [vmem:[%s1 + $0x78] sm:$0xff]
    %v1661 = vld [vmem:[%s1 + $0x80] sm:$0xff]
    %v1662 = vld [vmem:[%s1 + $0x88] sm:$0xff]
    %v1663 = vld [vmem:[%s1 + $0x90] sm:$0xff]
    %v1664 = vld [vmem:[%s1 + $0x98] sm:$0xff]
    %v1665 = vld [vmem:[%s1 + $0xa0] sm:$0xff]
    %v1666 = vld [vmem:[%s1 + $0xa8] sm:$0xff]
    %v1667 = vld [vmem:[%s1 + $0xb0] sm:$0xff]
    %v1668 = vld [vmem:[%s1 + $0xb8] sm:$0xff]
    %v1669 = vld [vmem:[%s1 + $0xc0] sm:$0xff]
    %v1670 = vld [vmem:[%s1 + $0xc8] sm:$0xff]
    %v1671 = vld [vmem:[%s1 + $0xd0] sm:$0xff]
    %v1672 = vld [vmem:[%s1 + $0xd8] sm:$0xff]
    %v1673 = vld [vmem:[%s1 + $0xe0] sm:$0xff]
    %v1674 = vld [vmem:[%s1 + $0xe8] sm:$0xff]
    %v1675 = vld [vmem:[%s1 + $0xf0] sm:$0xff]
    %v1676 = vld [vmem:[%s1 + $0xf8] sm:$0xff]
    %v1677 = vsub.f32 %v1580, %v1645
    %v1678 = vsub.f32 %v1581, %v1646
    %v1679 = vsub.f32 %v1582, %v1647
    %v1680 = vsub.f32 %v1583, %v1648
    %v1681 = vsub.f32 %v1584, %v1649
    %v1682 = vsub.f32 %v1585, %v1650
    %v1683 = vsub.f32 %v1586, %v1651
    %v1684 = vsub.f32 %v1587, %v1652
    %v1685 = vsub.f32 %v1588, %v1653
    %v1686 = vsub.f32 %v1589, %v1654
    %v1687 = vsub.f32 %v1590, %v1655
    %v1688 = vsub.f32 %v1591, %v1656
    %v1689 = vsub.f32 %v1592, %v1657
    %v1690 = vsub.f32 %v1593, %v1658
    %v1691 = vsub.f32 %v1594, %v1659
    %v1692 = vsub.f32 %v1595, %v1660
    %v1693 = vsub.f32 %v1596, %v1661
    %v1694 = vsub.f32 %v1597, %v1662
    %v1695 = vsub.f32 %v1598, %v1663
    %v1696 = vsub.f32 %v1599, %v1664
    %v1697 = vsub.f32 %v1600, %v1665
    %v1698 = vsub.f32 %v1601, %v1666
    %v1699 = vsub.f32 %v1602, %v1667
    %v1700 = vsub.f32 %v1603, %v1668
    %v1701 = vsub.f32 %v1604, %v1669
    %v1702 = vsub.f32 %v1605, %v1670
    %v1703 = vsub.f32 %v1606, %v1671
    %v1704 = vsub.f32 %v1607, %v1672
    %v1705 = vsub.f32 %v1608, %v1673
    %v1706 = vsub.f32 %v1609, %v1674
    %v1707 = vsub.f32 %v1610, %v1675
    %v1708 = vsub.f32 %v1611, %v1676
    %v1709 = vmul.f32 %v1677, %v1677
    %v1710 = vmul.f32 %v1678, %v1678
    %v1711 = vmul.f32 %v1679, %v1679
    %v1712 = vmul.f32 %v1680, %v1680
    %v1713 = vmul.f32 %v1681, %v1681
    %v1714 = vmul.f32 %v1682, %v1682
    %v1715 = vmul.f32 %v1683, %v1683
    %v1716 = vmul.f32 %v1684, %v1684
    %v1717 = vmul.f32 %v1685, %v1685
    %v1718 = vmul.f32 %v1686, %v1686
    %v1719 = vmul.f32 %v1687, %v1687
    %v1720 = vmul.f32 %v1688, %v1688
    %v1721 = vmul.f32 %v1689, %v1689
    %v1722 = vmul.f32 %v1690, %v1690
    %v1723 = vmul.f32 %v1691, %v1691
    %v1724 = vmul.f32 %v1692, %v1692
    %v1725 = vmul.f32 %v1693, %v1693
    %v1726 = vmul.f32 %v1694, %v1694
    %v1727 = vmul.f32 %v1695, %v1695
    %v1728 = vmul.f32 %v1696, %v1696
    %v1729 = vmul.f32 %v1697, %v1697
    %v1730 = vmul.f32 %v1698, %v1698
    %v1731 = vmul.f32 %v1699, %v1699
    %v1732 = vmul.f32 %v1700, %v1700
    %v1733 = vmul.f32 %v1701, %v1701
    %v1734 = vmul.f32 %v1702, %v1702
    %v1735 = vmul.f32 %v1703, %v1703
    %v1736 = vmul.f32 %v1704, %v1704
    %v1737 = vmul.f32 %v1705, %v1705
    %v1738 = vmul.f32 %v1706, %v1706
    %v1739 = vmul.f32 %v1707, %v1707
    %v1740 = vmul.f32 %v1708, %v1708
    %v1741 = vsel %vm1612, %v1709, 0.0
    %v1742 = vsel %vm1612, %v1710, 0.0
    %v1743 = vadd.f32 %v1741, %v1742
    %v1744 = vsel %vm1612, %v1711, 0.0
    %v1745 = vadd.f32 %v1743, %v1744
    %v1746 = vsel %vm1612, %v1712, 0.0
    %v1747 = vadd.f32 %v1745, %v1746
    %v1748 = vsel %vm1612, %v1713, 0.0
    %v1749 = vadd.f32 %v1747, %v1748
    %v1750 = vsel %vm1612, %v1714, 0.0
    %v1751 = vadd.f32 %v1749, %v1750
    %v1752 = vsel %vm1612, %v1715, 0.0
    %v1753 = vadd.f32 %v1751, %v1752
    %v1754 = vsel %vm1612, %v1716, 0.0
    %v1755 = vadd.f32 %v1753, %v1754
    %v1756 = vsel %vm1612, %v1717, 0.0
    %v1757 = vadd.f32 %v1755, %v1756
    %v1758 = vsel %vm1612, %v1718, 0.0
    %v1759 = vadd.f32 %v1757, %v1758
    %v1760 = vsel %vm1612, %v1719, 0.0
    %v1761 = vadd.f32 %v1759, %v1760
    %v1762 = vsel %vm1612, %v1720, 0.0
    %v1763 = vadd.f32 %v1761, %v1762
    %v1764 = vsel %vm1612, %v1721, 0.0
    %v1765 = vadd.f32 %v1763, %v1764
    %v1766 = vsel %vm1612, %v1722, 0.0
    %v1767 = vadd.f32 %v1765, %v1766
    %v1768 = vsel %vm1612, %v1723, 0.0
    %v1769 = vadd.f32 %v1767, %v1768
    %v1770 = vsel %vm1612, %v1724, 0.0
    %v1771 = vadd.f32 %v1769, %v1770
    %v1772 = vsel %vm1612, %v1725, 0.0
    %v1773 = vadd.f32 %v1771, %v1772
    %v1774 = vsel %vm1612, %v1726, 0.0
    %v1775 = vadd.f32 %v1773, %v1774
    %v1776 = vsel %vm1612, %v1727, 0.0
    %v1777 = vadd.f32 %v1775, %v1776
    %v1778 = vsel %vm1612, %v1728, 0.0
    %v1779 = vadd.f32 %v1777, %v1778
    %v1780 = vsel %vm1612, %v1729, 0.0
    %v1781 = vadd.f32 %v1779, %v1780
    %v1782 = vsel %vm1612, %v1730, 0.0
    %v1783 = vadd.f32 %v1781, %v1782
    %v1784 = vsel %vm1612, %v1731, 0.0
    %v1785 = vadd.f32 %v1783, %v1784
    %v1786 = vsel %vm1612, %v1732, 0.0
    %v1787 = vadd.f32 %v1785, %v1786
    %v1788 = vsel %vm1612, %v1733, 0.0
    %v1789 = vadd.f32 %v1787, %v1788
    %v1790 = vsel %vm1612, %v1734, 0.0
    %v1791 = vadd.f32 %v1789, %v1790
    %v1792 = vsel %vm1612, %v1735, 0.0
    %v1793 = vadd.f32 %v1791, %v1792
    %v1794 = vsel %vm1612, %v1736, 0.0
    %v1795 = vadd.f32 %v1793, %v1794
    %v1796 = vsel %vm1612, %v1737, 0.0
    %v1797 = vadd.f32 %v1795, %v1796
    %v1798 = vsel %vm1612, %v1738, 0.0
    %v1799 = vadd.f32 %v1797, %v1798
    %v1800 = vsel %vm1612, %v1739, 0.0
    %v1801 = vadd.f32 %v1799, %v1800
    %v1802 = vsel %vm1612, %v1740, 0.0
    %v1803 = vadd.f32 %v1801, %v1802
    %1804 = vadd.xlane.f32.xlu0 %v1803
    %v1805 = vpop.xlane.xlu0 %1804
    %v1806 = vrot.slane %v1805, 4
    %v1807 = vadd.f32 %v1805, %v1806
    %v1808 = vrot.slane %v1807, 2
    %v1809 = vadd.f32 %v1807, %v1808
    %v1810 = vrot.slane %v1809, 1
    %v1811 = vadd.f32 %v1809, %v1810
    %s1812 = vtos %v1811
    %s1813 = smul.f32 %s1812, 0.00390625
    %s1814 = scalar_lea.smem [#allocation2], 0
    %1815 = sst [smem:[%s1814]] %s1813
    // Predicated region
    $region26: #{tpu_custom_call.1} parent=1 // pred_check
      _
    $region27: #{tpu_custom_call.1} parent=1 // pred_check_branch
      %1817 = sbr.rel (0) target = $region29
    $region28: #{tpu_custom_call.1} parent=1 // pred_region
      %s1819 = ssub.s32 16, 16
      %1820 = vsyncadd [#allocation3], %s1819
      %1823 = dma.smem_to_hbm [#allocation2], 16, %s6, [#allocation3]
    $region29: #{tpu_custom_call.1} parent=1 // pred_fallthru
      _
    // Predicated region
    $region30: #{tpu_custom_call.1} parent=1 // pred_check
      _
    $region31: #{tpu_custom_call.1} parent=1 // pred_check_branch
      %1825 = sbr.rel (0) target = $region33
    $region32: #{tpu_custom_call.1} parent=1 // pred_region
      _
    $region33: #{tpu_custom_call.1} parent=1 // pred_fallthru
      _
    // Predicated region
    $region34: #{tpu_custom_call.1} parent=1 // pred_check
      _
    $region35: #{tpu_custom_call.1} parent=1 // pred_check_branch
      %1827 = sbr.rel (0) target = $region37
    $region36: #{tpu_custom_call.1} parent=1 // pred_region
      %1828 = dma.done [#allocation3], 16
    $region37: #{tpu_custom_call.1} parent=1 // pred_fallthru
      _
    // Predicated region
    $region38: #{tpu_custom_call.1} parent=1 // pred_check
      _
    $region39: #{tpu_custom_call.1} parent=1 // pred_check_branch
      %1830 = sbr.rel (0) target = $region41
    $region40: #{tpu_custom_call.1} parent=1 // pred_region
      _
    $region41: #{tpu_custom_call.1} parent=1 // pred_fallthru
      _
    %1831 = sfence
    %1832 = vsyncpa [#allocation3], 1

</llo_original>
